<compile_context>
chip_gen: v5e
topology: v5e:2x2
jax: 0.10.0
libtpu: 0.0.40
codegen_flags: <defaults>
</compile_context>

<pallas_src>
import jax
import jax.numpy as jnp
from jax.experimental import pallas as pl
from jax.experimental.pallas import tpu as pltpu

# ---------------- config (small, shapes consistent with a tiny GPT) ----------------
VOCAB = 128
SEQ = 8
HIDDEN = 32
NHEAD = 4
HEAD_DIM = HIDDEN // NHEAD
MLP_HIDDEN = 4 * HIDDEN
DEPTH = 2
BATCH = 2
LN_EPS = 1e-5


# ---------------- in-kernel helpers ----------------
def _layernorm(x, gamma, beta):
    """One-pass LN: the mean and mean-of-squares reductions are independent (shorter chain)."""
    mu = jnp.mean(x, axis=-1, keepdims=True)
    ms = jnp.mean(x * x, axis=-1, keepdims=True)
    var = ms - mu * mu
    return (x - mu) * jax.lax.rsqrt(var + LN_EPS) * gamma + beta


# ---------------- fused pipeline-stage kernel ----------------
def gpt_stage_kernel(x_ref, bias_ref, ln_ref, wqkv_ref, wo_ref, w1_ref, w2_ref,
                     whead_ref, out_ref):
    x = x_ref[...]                          # (R, H) f32 residual stream, R = B*S
    bias = bias_ref[...]                    # (NHEAD*R, NHEAD*R) f32 precombined attn bias
    rows = x.shape[0]
    n_layers = wqkv_ref.shape[0]
    bf16 = jnp.bfloat16

    for layer in range(n_layers):           # static unroll; all weights resident in VMEM
        lnp = ln_ref[layer]                 # (4, H) f32: [ln1_g, ln1_b, ln2_g, ln2_b]
        wqkv = wqkv_ref[layer]              # (H+1, 3H) bf16, last row = bias
        wo = wo_ref[layer]                  # (H+1, H)  bf16
        w1 = w1_ref[layer]                  # (H+1, 4H) bf16
        w2 = w2_ref[layer]                  # (4H+1, H) bf16

        # ---- attention sub-layer (pre-LN) ----
        residual = x
        h = _layernorm(x, lnp[0:1, :], lnp[1:2, :])
        # 1/sqrt(HEAD_DIM) is folded into the Q columns of w_qkv / b_qkv on the host.
        qkv = (jnp.dot(h.astype(bf16), wqkv[:HIDDEN, :],
                       preferred_element_type=jnp.float32)
               + wqkv[HIDDEN:HIDDEN + 1, :].astype(jnp.float32))           # (R, 3H) f32

        # Stack heads on the sublane axis -> ONE score matmul + ONE P@V matmul.
        q_s = jnp.concatenate(
            [qkv[:, hh * HEAD_DIM:(hh + 1) * HEAD_DIM] for hh in range(NHEAD)], axis=0)
        k_s = jnp.concatenate(
            [qkv[:, HIDDEN + hh * HEAD_DIM:HIDDEN + (hh + 1) * HEAD_DIM]
             for hh in range(NHEAD)], axis=0)
        v_s = jnp.concatenate(
            [qkv[:, 2 * HIDDEN + hh * HEAD_DIM:2 * HIDDEN + (hh + 1) * HEAD_DIM]
             for hh in range(NHEAD)], axis=0)                              # (NHEAD*R, hd)

        s = jax.lax.dot_general(q_s.astype(bf16), k_s.astype(bf16),
                                (((1,), (1,)), ((), ())),
                                preferred_element_type=jnp.float32)        # (NHEAD*R, NHEAD*R)
        s = s + bias
        # No row-max subtraction: valid scores are tiny and masked entries (-1e4) underflow
        # to exactly 0; the +1e-30 guard keeps a fully-padded query row finite (p -> 0).
        e = jnp.exp(s)
        p = e * pl.reciprocal(jnp.sum(e, axis=-1, keepdims=True) + 1e-30, approx=True)
        o_s = jnp.dot(p.astype(bf16), v_s.astype(bf16),
                      preferred_element_type=jnp.float32)                  # (NHEAD*R, hd)

        # Un-stack heads back onto lanes and run ONE fused output projection.
        o_all = jnp.concatenate(
            [o_s[hh * rows:(hh + 1) * rows, :] for hh in range(NHEAD)], axis=-1)   # (R, H)
        attn = (jnp.dot(o_all.astype(bf16), wo[:HIDDEN, :],
                        preferred_element_type=jnp.float32)
                + wo[HIDDEN:HIDDEN + 1, :].astype(jnp.float32))
        x = residual + attn

        # ---- MLP sub-layer (pre-LN) ----
        residual = x
        h = _layernorm(x, lnp[2:3, :], lnp[3:4, :])
        h = (jnp.dot(h.astype(bf16), w1[:HIDDEN, :],
                     preferred_element_type=jnp.float32)
             + w1[HIDDEN:HIDDEN + 1, :].astype(jnp.float32))
        # TODO(synk): PyTorch nn.GELU defaults to exact erf; tanh approximation used here.
        h = jax.nn.gelu(h)
        h = (jnp.dot(h.astype(bf16), w2[:MLP_HIDDEN, :],
                     preferred_element_type=jnp.float32)
             + w2[MLP_HIDDEN:MLP_HIDDEN + 1, :].astype(jnp.float32))
        x = residual + h

    # ---- final LN + tied LM head (lane-dense (R, 128) output, unmasked stores) ----
    lnf = ln_ref[n_layers]
    h = _layernorm(x, lnf[0:1, :], lnf[1:2, :])
    out_ref[...] = jnp.dot(h.astype(bf16), whead_ref[...],
                           preferred_element_type=jnp.float32).astype(out_ref.dtype)


def _fused_call(x2, bias, fp):
    vmem = pl.BlockSpec(memory_space=pltpu.MemorySpace.VMEM)
    args = (x2, bias, fp["ln_slab"], fp["wqkv_slab"], fp["wo_slab"],
            fp["w1_slab"], fp["w2_slab"], fp["w_head"])
    # NOTE: gridless -> single TensorCore; add a "parallel" batch grid axis on v7x once
    # B*S grows enough that the idle second core matters more than per-step overhead.
    return pl.pallas_call(
        gpt_stage_kernel,
        out_shape=jax.ShapeDtypeStruct((x2.shape[0], VOCAB), jnp.float32),
        in_specs=[vmem] * len(args),
        out_specs=vmem,
    )(*args)


# ---------------- parameters (deterministic, synthetic) ----------------
def init_params(key):
    keys = iter(jax.random.split(key, 64))
    std = 0.02

    def rnd(shape):
        return (std * jax.random.normal(next(keys), shape)).astype(jnp.float32)

    params = {
        "wte": rnd((VOCAB, HIDDEN)),
        "wpe": rnd((SEQ, HIDDEN)),
        "blocks": [],
        "lnf_g": jnp.ones((1, HIDDEN), jnp.float32),
        "lnf_b": jnp.zeros((1, HIDDEN), jnp.float32),
    }
    for _ in range(DEPTH):
        params["blocks"].append({
            "ln1_g": jnp.ones((1, HIDDEN), jnp.float32),
            "ln1_b": jnp.zeros((1, HIDDEN), jnp.float32),
            "w_qkv": rnd((HIDDEN, 3 * HIDDEN)),
            "b_qkv": jnp.zeros((1, 3 * HIDDEN), jnp.float32),
            "w_o":   rnd((HIDDEN, HIDDEN)),
            "b_o":   jnp.zeros((1, HIDDEN), jnp.float32),
            "ln2_g": jnp.ones((1, HIDDEN), jnp.float32),
            "ln2_b": jnp.zeros((1, HIDDEN), jnp.float32),
            "w_fc1": rnd((HIDDEN, MLP_HIDDEN)),
            "b_fc1": jnp.zeros((1, MLP_HIDDEN), jnp.float32),
            "w_fc2": rnd((MLP_HIDDEN, HIDDEN)),
            "b_fc2": jnp.zeros((1, HIDDEN), jnp.float32),
        })
    # LM head tied to the token embedding (GPTLMHead1D style, no bias)
    params["w_head"] = params["wte"].T  # (HIDDEN, VOCAB)
    return params


def fuse_params(params):
    """Stack per-layer weights, fold the Q scale, pack biases/LN into slabs, cast to bf16."""
    blocks = params["blocks"]
    scale = 1.0 / (HEAD_DIM ** 0.5)

    def stack(name):
        return jnp.stack([blk[name] for blk in blocks], axis=0)

    w_qkv = stack("w_qkv").at[:, :, :HIDDEN].multiply(scale)
    b_qkv = stack("b_qkv").at[:, :, :HIDDEN].multiply(scale)

    fp = {
        # weight slab + its bias as one extra sublane row; bf16 is the MXU-native input dtype
        "wqkv_slab": jnp.concatenate([w_qkv, b_qkv], axis=1).astype(jnp.bfloat16),        # (D, H+1, 3H)
        "wo_slab": jnp.concatenate([stack("w_o"), stack("b_o")], axis=1).astype(jnp.bfloat16),   # (D, H+1, H)
        "w1_slab": jnp.concatenate([stack("w_fc1"), stack("b_fc1")], axis=1).astype(jnp.bfloat16),  # (D, H+1, 4H)
        "w2_slab": jnp.concatenate([stack("w_fc2"), stack("b_fc2")], axis=1).astype(jnp.bfloat16),  # (D, 4H+1, H)
        "w_head": params["w_head"].astype(jnp.bfloat16),                                   # (H, VOCAB)
    }
    # All LN params in one (DEPTH+1, 4, H) f32 slab; last entry carries the final LN.
    ln_layers = jnp.stack(
        [jnp.concatenate([blk["ln1_g"], blk["ln1_b"], blk["ln2_g"], blk["ln2_b"]], axis=0)
         for blk in blocks], axis=0)
    ln_final = jnp.concatenate(
        [params["lnf_g"], params["lnf_b"],
         jnp.ones((1, HIDDEN), jnp.float32), jnp.zeros((1, HIDDEN), jnp.float32)],
        axis=0)[None]
    fp["ln_slab"] = jnp.concatenate([ln_layers, ln_final], axis=0).astype(jnp.float32)
    fp["wte"] = params["wte"]
    fp["wpe"] = params["wpe"]
    return fp


# ---------------- full forward (GenericPipelineGPT semantics) ----------------
@jax.jit
def gpt_forward(input_ids, attention_mask, fp):
    B, S = input_ids.shape
    # embedding (glue: gather in plain JAX)
    tok = jnp.take(fp["wte"], input_ids, axis=0)             # (B, S, H)
    pos = fp["wpe"][None, :S, :]
    x2 = (tok + pos).astype(jnp.float32).reshape(B * S, HIDDEN)   # row-flat slab

    # ONE precombined additive attention bias for the head-stacked score matrix:
    #   head block-diag x batch block-diag x causal structure + key-padding (1-mask)*-10000
    # (GenericPipelineGPT.forward semantics: attention_mask.view(B,-1); (1-mask)*-10000).
    r = jnp.arange(B * S)
    same_batch = (r[:, None] // S) == (r[None, :] // S)
    causal = (r[:, None] % S) >= (r[None, :] % S)
    pad = (1.0 - attention_mask.reshape(1, B * S).astype(jnp.float32)) * -10000.0
    bias16 = jnp.where(same_batch & causal, 0.0, -10000.0) + pad            # (B*S, B*S)
    rh = jnp.arange(NHEAD * B * S)
    same_head = (rh[:, None] // (B * S)) == (rh[None, :] // (B * S))
    bias = jnp.where(same_head, jnp.tile(bias16, (NHEAD, NHEAD)),
                     -10000.0).astype(jnp.float32)                          # (NHEAD*B*S,)^2

    logits = _fused_call(x2, bias, fp)                       # (B*S, VOCAB), lane-dense
    return logits.reshape(B, S, VOCAB)


# ---------------- pure-JAX reference (for a sanity check) ----------------
def gpt_forward_ref(input_ids, attention_mask, params):
    B, S = input_ids.shape
    tok = jnp.take(params["wte"], input_ids, axis=0)
    pos = params["wpe"][None, :S, :]
    x = (tok + pos).astype(jnp.float32)
    maskb = attention_mask.reshape(B, S).astype(jnp.float32)
    key_bias = (1.0 - maskb) * -10000.0                       # (B, S)
    causal = jnp.arange(S)[:, None] >= jnp.arange(S)[None, :]
    causal_bias = jnp.where(causal, 0.0, -10000.0)            # (S, S)
    scale = 1.0 / (HEAD_DIM ** 0.5)

    def ln(y, g, b):
        mu = y.mean(-1, keepdims=True)
        var = ((y - mu) ** 2).mean(-1, keepdims=True)
        return (y - mu) * jax.lax.rsqrt(var + LN_EPS) * g + b

    for blk in params["blocks"]:
        res = x
        h = ln(x, blk["ln1_g"], blk["ln1_b"])
        qkv = h @ blk["w_qkv"] + blk["b_qkv"]
        q, k, v = jnp.split(qkv, 3, axis=-1)
        q = q.reshape(B, S, NHEAD, HEAD_DIM).transpose(0, 2, 1, 3)
        k = k.reshape(B, S, NHEAD, HEAD_DIM).transpose(0, 2, 1, 3)
        v = v.reshape(B, S, NHEAD, HEAD_DIM).transpose(0, 2, 1, 3)
        s = jnp.einsum("bhqd,bhkd->bhqk", q, k) * scale
        s = s + causal_bias[None, None, :, :] + key_bias[:, None, None, :]
        p = jax.nn.softmax(s, axis=-1)
        o = jnp.einsum("bhqk,bhkd->bhqd", p, v)
        o = o.transpose(0, 2, 1, 3).reshape(B, S, HIDDEN)
        x = res + o @ blk["w_o"] + blk["b_o"]
        res = x
        h = ln(x, blk["ln2_g"], blk["ln2_b"])
        h = jax.nn.gelu(h @ blk["w_fc1"] + blk["b_fc1"])
        x = res + h @ blk["w_fc2"] + blk["b_fc2"]
    h = ln(x, params["lnf_g"], params["lnf_b"])
    return h @ params["w_head"]


if __name__ == "__main__":
    key = jax.random.PRNGKey(0)
    k_param, k_ids = jax.random.split(key)
    params = init_params(k_param)
    fused = fuse_params(params)

    input_ids = jax.random.randint(k_ids, (BATCH, SEQ), 0, VOCAB, dtype=jnp.int32)
    attention_mask = jnp.ones((BATCH, SEQ), jnp.float32)
    attention_mask = attention_mask.at[1, -2:].set(0.0)  # some padding in batch 1

    logits = gpt_forward(input_ids, attention_mask, fused)
    jax.block_until_ready(logits)
    assert logits.shape == (BATCH, SEQ, VOCAB)
    assert bool(jnp.all(jnp.isfinite(logits)))

    ref = gpt_forward_ref(input_ids, attention_mask, params)
    err = float(jnp.max(jnp.abs(logits - ref)))
    assert err < 2e-2, f"mismatch vs pure-JAX reference: {err}"
    print("KERNEL_OK")
</pallas_src>

<mosaic_0001>
module attributes {stable_mosaic.version = 11 : i64} {
  func.func @gpt_stage_kernel(%arg0: memref<16x32xf32, #tpu.memory_space<vmem>>, %arg1: memref<64x64xf32, #tpu.memory_space<vmem>>, %arg2: memref<3x4x32xf32, #tpu.memory_space<vmem>>, %arg3: memref<2x33x96xbf16, #tpu.memory_space<vmem>>, %arg4: memref<2x33x32xbf16, #tpu.memory_space<vmem>>, %arg5: memref<2x33x128xbf16, #tpu.memory_space<vmem>>, %arg6: memref<2x129x32xbf16, #tpu.memory_space<vmem>>, %arg7: memref<32x128xbf16, #tpu.memory_space<vmem>>, %arg8: memref<16x128xf32, #tpu.memory_space<vmem>>) attributes {dimension_semantics = [], scalar_prefetch = 0 : i64, scratch_operands = 0 : i64, tpu.core_type = #tpu.core_type<tc>} {
    %c0 = arith.constant 0 : index
    %c0_0 = arith.constant 0 : index
    %0 = vector.load %arg0[%c0, %c0_0] : memref<16x32xf32, #tpu.memory_space<vmem>>, vector<16x32xf32>
    %c0_1 = arith.constant 0 : index
    %c0_2 = arith.constant 0 : index
    %1 = vector.load %arg1[%c0_1, %c0_2] : memref<64x64xf32, #tpu.memory_space<vmem>>, vector<64x64xf32>
    %c0_3 = arith.constant 0 : index
    %c0_4 = arith.constant 0 : index
    %c0_5 = arith.constant 0 : index
    %2 = vector.load %arg2[%c0_3, %c0_4, %c0_5] : memref<3x4x32xf32, #tpu.memory_space<vmem>>, vector<1x4x32xf32>
    %3 = vector.shape_cast %2 : vector<1x4x32xf32> to vector<4x32xf32>
    %c0_6 = arith.constant 0 : index
    %c0_7 = arith.constant 0 : index
    %c0_8 = arith.constant 0 : index
    %4 = vector.load %arg3[%c0_6, %c0_7, %c0_8] : memref<2x33x96xbf16, #tpu.memory_space<vmem>>, vector<1x33x96xbf16>
    %5 = vector.shape_cast %4 : vector<1x33x96xbf16> to vector<33x96xbf16>
    %c0_9 = arith.constant 0 : index
    %c0_10 = arith.constant 0 : index
    %c0_11 = arith.constant 0 : index
    %6 = vector.load %arg4[%c0_9, %c0_10, %c0_11] : memref<2x33x32xbf16, #tpu.memory_space<vmem>>, vector<1x33x32xbf16>
    %7 = vector.shape_cast %6 : vector<1x33x32xbf16> to vector<33x32xbf16>
    %c0_12 = arith.constant 0 : index
    %c0_13 = arith.constant 0 : index
    %c0_14 = arith.constant 0 : index
    %8 = vector.load %arg5[%c0_12, %c0_13, %c0_14] : memref<2x33x128xbf16, #tpu.memory_space<vmem>>, vector<1x33x128xbf16>
    %9 = vector.shape_cast %8 : vector<1x33x128xbf16> to vector<33x128xbf16>
    %c0_15 = arith.constant 0 : index
    %c0_16 = arith.constant 0 : index
    %c0_17 = arith.constant 0 : index
    %10 = vector.load %arg6[%c0_15, %c0_16, %c0_17] : memref<2x129x32xbf16, #tpu.memory_space<vmem>>, vector<1x129x32xbf16>
    %11 = vector.shape_cast %10 : vector<1x129x32xbf16> to vector<129x32xbf16>
    %12 = vector.extract_strided_slice %3 {offsets = [0, 0], sizes = [1, 32], strides = [1, 1]} : vector<4x32xf32> to vector<1x32xf32>
    %13 = vector.extract_strided_slice %3 {offsets = [1, 0], sizes = [1, 32], strides = [1, 1]} : vector<4x32xf32> to vector<1x32xf32>
    %cst = arith.constant dense<0.000000e+00> : vector<16xf32>
    %14 = vector.multi_reduction <add>, %0, %cst [1] : vector<16x32xf32> to vector<16xf32>
    %15 = vector.shape_cast %14 : vector<16xf32> to vector<16x1xf32>
    %cst_18 = arith.constant 3.200000e+01 : f32
    %16 = vector.broadcast %cst_18 : f32 to vector<16x1xf32>
    %17 = arith.divf %15, %16 : vector<16x1xf32>
    %18 = arith.mulf %0, %0 : vector<16x32xf32>
    %cst_19 = arith.constant dense<0.000000e+00> : vector<16xf32>
    %19 = vector.multi_reduction <add>, %18, %cst_19 [1] : vector<16x32xf32> to vector<16xf32>
    %20 = vector.shape_cast %19 : vector<16xf32> to vector<16x1xf32>
    %cst_20 = arith.constant 3.200000e+01 : f32
    %21 = vector.broadcast %cst_20 : f32 to vector<16x1xf32>
    %22 = arith.divf %20, %21 : vector<16x1xf32>
    %23 = arith.mulf %17, %17 : vector<16x1xf32>
    %24 = arith.subf %22, %23 : vector<16x1xf32>
    %25 = vector.broadcast %17 : vector<16x1xf32> to vector<16x32xf32>
    %26 = arith.subf %0, %25 : vector<16x32xf32>
    %cst_21 = arith.constant 9.99999974E-6 : f32
    %27 = vector.broadcast %cst_21 : f32 to vector<16x1xf32>
    %28 = arith.addf %24, %27 : vector<16x1xf32>
    %29 = math.rsqrt %28 : vector<16x1xf32>
    %30 = vector.broadcast %29 : vector<16x1xf32> to vector<16x32xf32>
    %31 = arith.mulf %26, %30 : vector<16x32xf32>
    %32 = vector.broadcast %12 : vector<1x32xf32> to vector<16x32xf32>
    %33 = arith.mulf %31, %32 : vector<16x32xf32>
    %34 = vector.broadcast %13 : vector<1x32xf32> to vector<16x32xf32>
    %35 = arith.addf %33, %34 : vector<16x32xf32>
    %36 = arith.truncf %35 : vector<16x32xf32> to vector<16x32xbf16>
    %37 = vector.extract_strided_slice %5 {offsets = [0, 0], sizes = [32, 96], strides = [1, 1]} : vector<33x96xbf16> to vector<32x96xbf16>
    %cst_22 = arith.constant dense<0.000000e+00> : vector<16x96xf32>
    %38 = tpu.matmul %36, %37, %cst_22 {dimension_numbers = #tpu.dot_dimension_numbers<[1], [0], [0], [1], [0, 0, 1, 1], [], []>} : vector<16x32xbf16>, vector<32x96xbf16>, vector<16x96xf32> -> vector<16x96xf32>
    %39 = vector.extract_strided_slice %5 {offsets = [32, 0], sizes = [1, 96], strides = [1, 1]} : vector<33x96xbf16> to vector<1x96xbf16>
    %40 = arith.extf %39 : vector<1x96xbf16> to vector<1x96xf32>
    %41 = vector.broadcast %40 : vector<1x96xf32> to vector<16x96xf32>
    %42 = arith.addf %38, %41 : vector<16x96xf32>
    %43 = vector.extract_strided_slice %42 {offsets = [0, 0], sizes = [16, 8], strides = [1, 1]} : vector<16x96xf32> to vector<16x8xf32>
    %44 = vector.extract_strided_slice %42 {offsets = [0, 8], sizes = [16, 8], strides = [1, 1]} : vector<16x96xf32> to vector<16x8xf32>
    %45 = vector.extract_strided_slice %42 {offsets = [0, 16], sizes = [16, 8], strides = [1, 1]} : vector<16x96xf32> to vector<16x8xf32>
    %46 = vector.extract_strided_slice %42 {offsets = [0, 24], sizes = [16, 8], strides = [1, 1]} : vector<16x96xf32> to vector<16x8xf32>
    %47 = tpu.concatenate %43, %44, %45, %46 in 0 : vector<16x8xf32>, vector<16x8xf32>, vector<16x8xf32>, vector<16x8xf32> -> vector<64x8xf32>
    %48 = vector.extract_strided_slice %42 {offsets = [0, 32], sizes = [16, 8], strides = [1, 1]} : vector<16x96xf32> to vector<16x8xf32>
    %49 = vector.extract_strided_slice %42 {offsets = [0, 40], sizes = [16, 8], strides = [1, 1]} : vector<16x96xf32> to vector<16x8xf32>
    %50 = vector.extract_strided_slice %42 {offsets = [0, 48], sizes = [16, 8], strides = [1, 1]} : vector<16x96xf32> to vector<16x8xf32>
    %51 = vector.extract_strided_slice %42 {offsets = [0, 56], sizes = [16, 8], strides = [1, 1]} : vector<16x96xf32> to vector<16x8xf32>
    %52 = tpu.concatenate %48, %49, %50, %51 in 0 : vector<16x8xf32>, vector<16x8xf32>, vector<16x8xf32>, vector<16x8xf32> -> vector<64x8xf32>
    %53 = vector.extract_strided_slice %42 {offsets = [0, 64], sizes = [16, 8], strides = [1, 1]} : vector<16x96xf32> to vector<16x8xf32>
    %54 = vector.extract_strided_slice %42 {offsets = [0, 72], sizes = [16, 8], strides = [1, 1]} : vector<16x96xf32> to vector<16x8xf32>
    %55 = vector.extract_strided_slice %42 {offsets = [0, 80], sizes = [16, 8], strides = [1, 1]} : vector<16x96xf32> to vector<16x8xf32>
    %56 = vector.extract_strided_slice %42 {offsets = [0, 88], sizes = [16, 8], strides = [1, 1]} : vector<16x96xf32> to vector<16x8xf32>
    %57 = tpu.concatenate %53, %54, %55, %56 in 0 : vector<16x8xf32>, vector<16x8xf32>, vector<16x8xf32>, vector<16x8xf32> -> vector<64x8xf32>
    %58 = arith.truncf %47 : vector<64x8xf32> to vector<64x8xbf16>
    %59 = arith.truncf %52 : vector<64x8xf32> to vector<64x8xbf16>
    %cst_23 = arith.constant dense<0.000000e+00> : vector<64x64xf32>
    %60 = tpu.matmul %58, %59, %cst_23 {dimension_numbers = #tpu.dot_dimension_numbers<[1], [1], [0], [0], [0, 0, 1, 0], [], []>} : vector<64x8xbf16>, vector<64x8xbf16>, vector<64x64xf32> -> vector<64x64xf32>
    %61 = arith.addf %60, %1 : vector<64x64xf32>
    %62 = math.exp %61 : vector<64x64xf32>
    %cst_24 = arith.constant dense<0.000000e+00> : vector<64xf32>
    %63 = vector.multi_reduction <add>, %62, %cst_24 [1] : vector<64x64xf32> to vector<64xf32>
    %64 = vector.shape_cast %63 : vector<64xf32> to vector<64x1xf32>
    %cst_25 = arith.constant 1.000000e-30 : f32
    %65 = vector.broadcast %cst_25 : f32 to vector<64x1xf32>
    %66 = arith.addf %64, %65 : vector<64x1xf32>
    %67 = tpu.reciprocal %66 {approx = true} : vector<64x1xf32> -> vector<64x1xf32>
    %68 = vector.broadcast %67 : vector<64x1xf32> to vector<64x64xf32>
    %69 = arith.mulf %62, %68 : vector<64x64xf32>
    %70 = arith.truncf %69 : vector<64x64xf32> to vector<64x64xbf16>
    %71 = arith.truncf %57 : vector<64x8xf32> to vector<64x8xbf16>
    %cst_26 = arith.constant dense<0.000000e+00> : vector<64x8xf32>
    %72 = tpu.matmul %70, %71, %cst_26 {dimension_numbers = #tpu.dot_dimension_numbers<[1], [0], [0], [1], [0, 0, 1, 1], [], []>} : vector<64x64xbf16>, vector<64x8xbf16>, vector<64x8xf32> -> vector<64x8xf32>
    %73 = vector.extract_strided_slice %72 {offsets = [0, 0], sizes = [16, 8], strides = [1, 1]} : vector<64x8xf32> to vector<16x8xf32>
    %74 = vector.extract_strided_slice %72 {offsets = [16, 0], sizes = [16, 8], strides = [1, 1]} : vector<64x8xf32> to vector<16x8xf32>
    %75 = vector.extract_strided_slice %72 {offsets = [32, 0], sizes = [16, 8], strides = [1, 1]} : vector<64x8xf32> to vector<16x8xf32>
    %76 = vector.extract_strided_slice %72 {offsets = [48, 0], sizes = [16, 8], strides = [1, 1]} : vector<64x8xf32> to vector<16x8xf32>
    %77 = tpu.concatenate %73, %74, %75, %76 in 1 : vector<16x8xf32>, vector<16x8xf32>, vector<16x8xf32>, vector<16x8xf32> -> vector<16x32xf32>
    %78 = arith.truncf %77 : vector<16x32xf32> to vector<16x32xbf16>
    %79 = vector.extract_strided_slice %7 {offsets = [0, 0], sizes = [32, 32], strides = [1, 1]} : vector<33x32xbf16> to vector<32x32xbf16>
    %cst_27 = arith.constant dense<0.000000e+00> : vector<16x32xf32>
    %80 = tpu.matmul %78, %79, %cst_27 {dimension_numbers = #tpu.dot_dimension_numbers<[1], [0], [0], [1], [0, 0, 1, 1], [], []>} : vector<16x32xbf16>, vector<32x32xbf16>, vector<16x32xf32> -> vector<16x32xf32>
    %81 = vector.extract_strided_slice %7 {offsets = [32, 0], sizes = [1, 32], strides = [1, 1]} : vector<33x32xbf16> to vector<1x32xbf16>
    %82 = arith.extf %81 : vector<1x32xbf16> to vector<1x32xf32>
    %83 = vector.broadcast %82 : vector<1x32xf32> to vector<16x32xf32>
    %84 = arith.addf %80, %83 : vector<16x32xf32>
    %85 = arith.addf %0, %84 : vector<16x32xf32>
    %86 = vector.extract_strided_slice %3 {offsets = [2, 0], sizes = [1, 32], strides = [1, 1]} : vector<4x32xf32> to vector<1x32xf32>
    %87 = vector.extract_strided_slice %3 {offsets = [3, 0], sizes = [1, 32], strides = [1, 1]} : vector<4x32xf32> to vector<1x32xf32>
    %cst_28 = arith.constant dense<0.000000e+00> : vector<16xf32>
    %88 = vector.multi_reduction <add>, %85, %cst_28 [1] : vector<16x32xf32> to vector<16xf32>
    %89 = vector.shape_cast %88 : vector<16xf32> to vector<16x1xf32>
    %cst_29 = arith.constant 3.200000e+01 : f32
    %90 = vector.broadcast %cst_29 : f32 to vector<16x1xf32>
    %91 = arith.divf %89, %90 : vector<16x1xf32>
    %92 = arith.mulf %85, %85 : vector<16x32xf32>
    %cst_30 = arith.constant dense<0.000000e+00> : vector<16xf32>
    %93 = vector.multi_reduction <add>, %92, %cst_30 [1] : vector<16x32xf32> to vector<16xf32>
    %94 = vector.shape_cast %93 : vector<16xf32> to vector<16x1xf32>
    %cst_31 = arith.constant 3.200000e+01 : f32
    %95 = vector.broadcast %cst_31 : f32 to vector<16x1xf32>
    %96 = arith.divf %94, %95 : vector<16x1xf32>
    %97 = arith.mulf %91, %91 : vector<16x1xf32>
    %98 = arith.subf %96, %97 : vector<16x1xf32>
    %99 = vector.broadcast %91 : vector<16x1xf32> to vector<16x32xf32>
    %100 = arith.subf %85, %99 : vector<16x32xf32>
    %cst_32 = arith.constant 9.99999974E-6 : f32
    %101 = vector.broadcast %cst_32 : f32 to vector<16x1xf32>
    %102 = arith.addf %98, %101 : vector<16x1xf32>
    %103 = math.rsqrt %102 : vector<16x1xf32>
    %104 = vector.broadcast %103 : vector<16x1xf32> to vector<16x32xf32>
    %105 = arith.mulf %100, %104 : vector<16x32xf32>
    %106 = vector.broadcast %86 : vector<1x32xf32> to vector<16x32xf32>
    %107 = arith.mulf %105, %106 : vector<16x32xf32>
    %108 = vector.broadcast %87 : vector<1x32xf32> to vector<16x32xf32>
    %109 = arith.addf %107, %108 : vector<16x32xf32>
    %110 = arith.truncf %109 : vector<16x32xf32> to vector<16x32xbf16>
    %111 = vector.extract_strided_slice %9 {offsets = [0, 0], sizes = [32, 128], strides = [1, 1]} : vector<33x128xbf16> to vector<32x128xbf16>
    %cst_33 = arith.constant dense<0.000000e+00> : vector<16x128xf32>
    %112 = tpu.matmul %110, %111, %cst_33 {dimension_numbers = #tpu.dot_dimension_numbers<[1], [0], [0], [1], [0, 0, 1, 1], [], []>} : vector<16x32xbf16>, vector<32x128xbf16>, vector<16x128xf32> -> vector<16x128xf32>
    %113 = vector.extract_strided_slice %9 {offsets = [32, 0], sizes = [1, 128], strides = [1, 1]} : vector<33x128xbf16> to vector<1x128xbf16>
    %114 = arith.extf %113 : vector<1x128xbf16> to vector<1x128xf32>
    %115 = vector.broadcast %114 : vector<1x128xf32> to vector<16x128xf32>
    %116 = arith.addf %112, %115 : vector<16x128xf32>
    %117 = arith.mulf %116, %116 : vector<16x128xf32>
    %118 = arith.mulf %116, %117 : vector<16x128xf32>
    %cst_34 = arith.constant 4.471500e-02 : f32
    %119 = vector.broadcast %cst_34 : f32 to vector<16x128xf32>
    %120 = arith.mulf %119, %118 : vector<16x128xf32>
    %121 = arith.addf %116, %120 : vector<16x128xf32>
    %cst_35 = arith.constant 0.797884583 : f32
    %122 = vector.broadcast %cst_35 : f32 to vector<16x128xf32>
    %123 = arith.mulf %122, %121 : vector<16x128xf32>
    %124 = math.tanh %123 : vector<16x128xf32>
    %cst_36 = arith.constant 1.000000e+00 : f32
    %125 = vector.broadcast %cst_36 : f32 to vector<16x128xf32>
    %126 = arith.addf %125, %124 : vector<16x128xf32>
    %cst_37 = arith.constant 5.000000e-01 : f32
    %127 = vector.broadcast %cst_37 : f32 to vector<16x128xf32>
    %128 = arith.mulf %127, %126 : vector<16x128xf32>
    %129 = arith.mulf %116, %128 : vector<16x128xf32>
    %130 = arith.truncf %129 : vector<16x128xf32> to vector<16x128xbf16>
    %131 = vector.extract_strided_slice %11 {offsets = [0, 0], sizes = [128, 32], strides = [1, 1]} : vector<129x32xbf16> to vector<128x32xbf16>
    %cst_38 = arith.constant dense<0.000000e+00> : vector<16x32xf32>
    %132 = tpu.matmul %130, %131, %cst_38 {dimension_numbers = #tpu.dot_dimension_numbers<[1], [0], [0], [1], [0, 0, 1, 1], [], []>} : vector<16x128xbf16>, vector<128x32xbf16>, vector<16x32xf32> -> vector<16x32xf32>
    %133 = vector.extract_strided_slice %11 {offsets = [128, 0], sizes = [1, 32], strides = [1, 1]} : vector<129x32xbf16> to vector<1x32xbf16>
    %134 = arith.extf %133 : vector<1x32xbf16> to vector<1x32xf32>
    %135 = vector.broadcast %134 : vector<1x32xf32> to vector<16x32xf32>
    %136 = arith.addf %132, %135 : vector<16x32xf32>
    %137 = arith.addf %85, %136 : vector<16x32xf32>
    %c1 = arith.constant 1 : index
    %c0_39 = arith.constant 0 : index
    %c0_40 = arith.constant 0 : index
    %138 = vector.load %arg2[%c1, %c0_39, %c0_40] : memref<3x4x32xf32, #tpu.memory_space<vmem>>, vector<1x4x32xf32>
    %139 = vector.shape_cast %138 : vector<1x4x32xf32> to vector<4x32xf32>
    %c1_41 = arith.constant 1 : index
    %c0_42 = arith.constant 0 : index
    %c0_43 = arith.constant 0 : index
    %140 = vector.load %arg3[%c1_41, %c0_42, %c0_43] : memref<2x33x96xbf16, #tpu.memory_space<vmem>>, vector<1x33x96xbf16>
    %141 = vector.shape_cast %140 : vector<1x33x96xbf16> to vector<33x96xbf16>
    %c1_44 = arith.constant 1 : index
    %c0_45 = arith.constant 0 : index
    %c0_46 = arith.constant 0 : index
    %142 = vector.load %arg4[%c1_44, %c0_45, %c0_46] : memref<2x33x32xbf16, #tpu.memory_space<vmem>>, vector<1x33x32xbf16>
    %143 = vector.shape_cast %142 : vector<1x33x32xbf16> to vector<33x32xbf16>
    %c1_47 = arith.constant 1 : index
    %c0_48 = arith.constant 0 : index
    %c0_49 = arith.constant 0 : index
    %144 = vector.load %arg5[%c1_47, %c0_48, %c0_49] : memref<2x33x128xbf16, #tpu.memory_space<vmem>>, vector<1x33x128xbf16>
    %145 = vector.shape_cast %144 : vector<1x33x128xbf16> to vector<33x128xbf16>
    %c1_50 = arith.constant 1 : index
    %c0_51 = arith.constant 0 : index
    %c0_52 = arith.constant 0 : index
    %146 = vector.load %arg6[%c1_50, %c0_51, %c0_52] : memref<2x129x32xbf16, #tpu.memory_space<vmem>>, vector<1x129x32xbf16>
    %147 = vector.shape_cast %146 : vector<1x129x32xbf16> to vector<129x32xbf16>
    %148 = vector.extract_strided_slice %139 {offsets = [0, 0], sizes = [1, 32], strides = [1, 1]} : vector<4x32xf32> to vector<1x32xf32>
    %149 = vector.extract_strided_slice %139 {offsets = [1, 0], sizes = [1, 32], strides = [1, 1]} : vector<4x32xf32> to vector<1x32xf32>
    %cst_53 = arith.constant dense<0.000000e+00> : vector<16xf32>
    %150 = vector.multi_reduction <add>, %137, %cst_53 [1] : vector<16x32xf32> to vector<16xf32>
    %151 = vector.shape_cast %150 : vector<16xf32> to vector<16x1xf32>
    %cst_54 = arith.constant 3.200000e+01 : f32
    %152 = vector.broadcast %cst_54 : f32 to vector<16x1xf32>
    %153 = arith.divf %151, %152 : vector<16x1xf32>
    %154 = arith.mulf %137, %137 : vector<16x32xf32>
    %cst_55 = arith.constant dense<0.000000e+00> : vector<16xf32>
    %155 = vector.multi_reduction <add>, %154, %cst_55 [1] : vector<16x32xf32> to vector<16xf32>
    %156 = vector.shape_cast %155 : vector<16xf32> to vector<16x1xf32>
    %cst_56 = arith.constant 3.200000e+01 : f32
    %157 = vector.broadcast %cst_56 : f32 to vector<16x1xf32>
    %158 = arith.divf %156, %157 : vector<16x1xf32>
    %159 = arith.mulf %153, %153 : vector<16x1xf32>
    %160 = arith.subf %158, %159 : vector<16x1xf32>
    %161 = vector.broadcast %153 : vector<16x1xf32> to vector<16x32xf32>
    %162 = arith.subf %137, %161 : vector<16x32xf32>
    %cst_57 = arith.constant 9.99999974E-6 : f32
    %163 = vector.broadcast %cst_57 : f32 to vector<16x1xf32>
    %164 = arith.addf %160, %163 : vector<16x1xf32>
    %165 = math.rsqrt %164 : vector<16x1xf32>
    %166 = vector.broadcast %165 : vector<16x1xf32> to vector<16x32xf32>
    %167 = arith.mulf %162, %166 : vector<16x32xf32>
    %168 = vector.broadcast %148 : vector<1x32xf32> to vector<16x32xf32>
    %169 = arith.mulf %167, %168 : vector<16x32xf32>
    %170 = vector.broadcast %149 : vector<1x32xf32> to vector<16x32xf32>
    %171 = arith.addf %169, %170 : vector<16x32xf32>
    %172 = arith.truncf %171 : vector<16x32xf32> to vector<16x32xbf16>
    %173 = vector.extract_strided_slice %141 {offsets = [0, 0], sizes = [32, 96], strides = [1, 1]} : vector<33x96xbf16> to vector<32x96xbf16>
    %cst_58 = arith.constant dense<0.000000e+00> : vector<16x96xf32>
    %174 = tpu.matmul %172, %173, %cst_58 {dimension_numbers = #tpu.dot_dimension_numbers<[1], [0], [0], [1], [0, 0, 1, 1], [], []>} : vector<16x32xbf16>, vector<32x96xbf16>, vector<16x96xf32> -> vector<16x96xf32>
    %175 = vector.extract_strided_slice %141 {offsets = [32, 0], sizes = [1, 96], strides = [1, 1]} : vector<33x96xbf16> to vector<1x96xbf16>
    %176 = arith.extf %175 : vector<1x96xbf16> to vector<1x96xf32>
    %177 = vector.broadcast %176 : vector<1x96xf32> to vector<16x96xf32>
    %178 = arith.addf %174, %177 : vector<16x96xf32>
    %179 = vector.extract_strided_slice %178 {offsets = [0, 0], sizes = [16, 8], strides = [1, 1]} : vector<16x96xf32> to vector<16x8xf32>
    %180 = vector.extract_strided_slice %178 {offsets = [0, 8], sizes = [16, 8], strides = [1, 1]} : vector<16x96xf32> to vector<16x8xf32>
    %181 = vector.extract_strided_slice %178 {offsets = [0, 16], sizes = [16, 8], strides = [1, 1]} : vector<16x96xf32> to vector<16x8xf32>
    %182 = vector.extract_strided_slice %178 {offsets = [0, 24], sizes = [16, 8], strides = [1, 1]} : vector<16x96xf32> to vector<16x8xf32>
    %183 = tpu.concatenate %179, %180, %181, %182 in 0 : vector<16x8xf32>, vector<16x8xf32>, vector<16x8xf32>, vector<16x8xf32> -> vector<64x8xf32>
    %184 = vector.extract_strided_slice %178 {offsets = [0, 32], sizes = [16, 8], strides = [1, 1]} : vector<16x96xf32> to vector<16x8xf32>
    %185 = vector.extract_strided_slice %178 {offsets = [0, 40], sizes = [16, 8], strides = [1, 1]} : vector<16x96xf32> to vector<16x8xf32>
    %186 = vector.extract_strided_slice %178 {offsets = [0, 48], sizes = [16, 8], strides = [1, 1]} : vector<16x96xf32> to vector<16x8xf32>
    %187 = vector.extract_strided_slice %178 {offsets = [0, 56], sizes = [16, 8], strides = [1, 1]} : vector<16x96xf32> to vector<16x8xf32>
    %188 = tpu.concatenate %184, %185, %186, %187 in 0 : vector<16x8xf32>, vector<16x8xf32>, vector<16x8xf32>, vector<16x8xf32> -> vector<64x8xf32>
    %189 = vector.extract_strided_slice %178 {offsets = [0, 64], sizes = [16, 8], strides = [1, 1]} : vector<16x96xf32> to vector<16x8xf32>
    %190 = vector.extract_strided_slice %178 {offsets = [0, 72], sizes = [16, 8], strides = [1, 1]} : vector<16x96xf32> to vector<16x8xf32>
    %191 = vector.extract_strided_slice %178 {offsets = [0, 80], sizes = [16, 8], strides = [1, 1]} : vector<16x96xf32> to vector<16x8xf32>
    %192 = vector.extract_strided_slice %178 {offsets = [0, 88], sizes = [16, 8], strides = [1, 1]} : vector<16x96xf32> to vector<16x8xf32>
    %193 = tpu.concatenate %189, %190, %191, %192 in 0 : vector<16x8xf32>, vector<16x8xf32>, vector<16x8xf32>, vector<16x8xf32> -> vector<64x8xf32>
    %194 = arith.truncf %183 : vector<64x8xf32> to vector<64x8xbf16>
    %195 = arith.truncf %188 : vector<64x8xf32> to vector<64x8xbf16>
    %cst_59 = arith.constant dense<0.000000e+00> : vector<64x64xf32>
    %196 = tpu.matmul %194, %195, %cst_59 {dimension_numbers = #tpu.dot_dimension_numbers<[1], [1], [0], [0], [0, 0, 1, 0], [], []>} : vector<64x8xbf16>, vector<64x8xbf16>, vector<64x64xf32> -> vector<64x64xf32>
    %197 = arith.addf %196, %1 : vector<64x64xf32>
    %198 = math.exp %197 : vector<64x64xf32>
    %cst_60 = arith.constant dense<0.000000e+00> : vector<64xf32>
    %199 = vector.multi_reduction <add>, %198, %cst_60 [1] : vector<64x64xf32> to vector<64xf32>
    %200 = vector.shape_cast %199 : vector<64xf32> to vector<64x1xf32>
    %cst_61 = arith.constant 1.000000e-30 : f32
    %201 = vector.broadcast %cst_61 : f32 to vector<64x1xf32>
    %202 = arith.addf %200, %201 : vector<64x1xf32>
    %203 = tpu.reciprocal %202 {approx = true} : vector<64x1xf32> -> vector<64x1xf32>
    %204 = vector.broadcast %203 : vector<64x1xf32> to vector<64x64xf32>
    %205 = arith.mulf %198, %204 : vector<64x64xf32>
    %206 = arith.truncf %205 : vector<64x64xf32> to vector<64x64xbf16>
    %207 = arith.truncf %193 : vector<64x8xf32> to vector<64x8xbf16>
    %cst_62 = arith.constant dense<0.000000e+00> : vector<64x8xf32>
    %208 = tpu.matmul %206, %207, %cst_62 {dimension_numbers = #tpu.dot_dimension_numbers<[1], [0], [0], [1], [0, 0, 1, 1], [], []>} : vector<64x64xbf16>, vector<64x8xbf16>, vector<64x8xf32> -> vector<64x8xf32>
    %209 = vector.extract_strided_slice %208 {offsets = [0, 0], sizes = [16, 8], strides = [1, 1]} : vector<64x8xf32> to vector<16x8xf32>
    %210 = vector.extract_strided_slice %208 {offsets = [16, 0], sizes = [16, 8], strides = [1, 1]} : vector<64x8xf32> to vector<16x8xf32>
    %211 = vector.extract_strided_slice %208 {offsets = [32, 0], sizes = [16, 8], strides = [1, 1]} : vector<64x8xf32> to vector<16x8xf32>
    %212 = vector.extract_strided_slice %208 {offsets = [48, 0], sizes = [16, 8], strides = [1, 1]} : vector<64x8xf32> to vector<16x8xf32>
    %213 = tpu.concatenate %209, %210, %211, %212 in 1 : vector<16x8xf32>, vector<16x8xf32>, vector<16x8xf32>, vector<16x8xf32> -> vector<16x32xf32>
    %214 = arith.truncf %213 : vector<16x32xf32> to vector<16x32xbf16>
    %215 = vector.extract_strided_slice %143 {offsets = [0, 0], sizes = [32, 32], strides = [1, 1]} : vector<33x32xbf16> to vector<32x32xbf16>
    %cst_63 = arith.constant dense<0.000000e+00> : vector<16x32xf32>
    %216 = tpu.matmul %214, %215, %cst_63 {dimension_numbers = #tpu.dot_dimension_numbers<[1], [0], [0], [1], [0, 0, 1, 1], [], []>} : vector<16x32xbf16>, vector<32x32xbf16>, vector<16x32xf32> -> vector<16x32xf32>
    %217 = vector.extract_strided_slice %143 {offsets = [32, 0], sizes = [1, 32], strides = [1, 1]} : vector<33x32xbf16> to vector<1x32xbf16>
    %218 = arith.extf %217 : vector<1x32xbf16> to vector<1x32xf32>
    %219 = vector.broadcast %218 : vector<1x32xf32> to vector<16x32xf32>
    %220 = arith.addf %216, %219 : vector<16x32xf32>
    %221 = arith.addf %137, %220 : vector<16x32xf32>
    %222 = vector.extract_strided_slice %139 {offsets = [2, 0], sizes = [1, 32], strides = [1, 1]} : vector<4x32xf32> to vector<1x32xf32>
    %223 = vector.extract_strided_slice %139 {offsets = [3, 0], sizes = [1, 32], strides = [1, 1]} : vector<4x32xf32> to vector<1x32xf32>
    %cst_64 = arith.constant dense<0.000000e+00> : vector<16xf32>
    %224 = vector.multi_reduction <add>, %221, %cst_64 [1] : vector<16x32xf32> to vector<16xf32>
    %225 = vector.shape_cast %224 : vector<16xf32> to vector<16x1xf32>
    %cst_65 = arith.constant 3.200000e+01 : f32
    %226 = vector.broadcast %cst_65 : f32 to vector<16x1xf32>
    %227 = arith.divf %225, %226 : vector<16x1xf32>
    %228 = arith.mulf %221, %221 : vector<16x32xf32>
    %cst_66 = arith.constant dense<0.000000e+00> : vector<16xf32>
    %229 = vector.multi_reduction <add>, %228, %cst_66 [1] : vector<16x32xf32> to vector<16xf32>
    %230 = vector.shape_cast %229 : vector<16xf32> to vector<16x1xf32>
    %cst_67 = arith.constant 3.200000e+01 : f32
    %231 = vector.broadcast %cst_67 : f32 to vector<16x1xf32>
    %232 = arith.divf %230, %231 : vector<16x1xf32>
    %233 = arith.mulf %227, %227 : vector<16x1xf32>
    %234 = arith.subf %232, %233 : vector<16x1xf32>
    %235 = vector.broadcast %227 : vector<16x1xf32> to vector<16x32xf32>
    %236 = arith.subf %221, %235 : vector<16x32xf32>
    %cst_68 = arith.constant 9.99999974E-6 : f32
    %237 = vector.broadcast %cst_68 : f32 to vector<16x1xf32>
    %238 = arith.addf %234, %237 : vector<16x1xf32>
    %239 = math.rsqrt %238 : vector<16x1xf32>
    %240 = vector.broadcast %239 : vector<16x1xf32> to vector<16x32xf32>
    %241 = arith.mulf %236, %240 : vector<16x32xf32>
    %242 = vector.broadcast %222 : vector<1x32xf32> to vector<16x32xf32>
    %243 = arith.mulf %241, %242 : vector<16x32xf32>
    %244 = vector.broadcast %223 : vector<1x32xf32> to vector<16x32xf32>
    %245 = arith.addf %243, %244 : vector<16x32xf32>
    %246 = arith.truncf %245 : vector<16x32xf32> to vector<16x32xbf16>
    %247 = vector.extract_strided_slice %145 {offsets = [0, 0], sizes = [32, 128], strides = [1, 1]} : vector<33x128xbf16> to vector<32x128xbf16>
    %cst_69 = arith.constant dense<0.000000e+00> : vector<16x128xf32>
    %248 = tpu.matmul %246, %247, %cst_69 {dimension_numbers = #tpu.dot_dimension_numbers<[1], [0], [0], [1], [0, 0, 1, 1], [], []>} : vector<16x32xbf16>, vector<32x128xbf16>, vector<16x128xf32> -> vector<16x128xf32>
    %249 = vector.extract_strided_slice %145 {offsets = [32, 0], sizes = [1, 128], strides = [1, 1]} : vector<33x128xbf16> to vector<1x128xbf16>
    %250 = arith.extf %249 : vector<1x128xbf16> to vector<1x128xf32>
    %251 = vector.broadcast %250 : vector<1x128xf32> to vector<16x128xf32>
    %252 = arith.addf %248, %251 : vector<16x128xf32>
    %253 = arith.mulf %252, %252 : vector<16x128xf32>
    %254 = arith.mulf %252, %253 : vector<16x128xf32>
    %cst_70 = arith.constant 4.471500e-02 : f32
    %255 = vector.broadcast %cst_70 : f32 to vector<16x128xf32>
    %256 = arith.mulf %255, %254 : vector<16x128xf32>
    %257 = arith.addf %252, %256 : vector<16x128xf32>
    %cst_71 = arith.constant 0.797884583 : f32
    %258 = vector.broadcast %cst_71 : f32 to vector<16x128xf32>
    %259 = arith.mulf %258, %257 : vector<16x128xf32>
    %260 = math.tanh %259 : vector<16x128xf32>
    %cst_72 = arith.constant 1.000000e+00 : f32
    %261 = vector.broadcast %cst_72 : f32 to vector<16x128xf32>
    %262 = arith.addf %261, %260 : vector<16x128xf32>
    %cst_73 = arith.constant 5.000000e-01 : f32
    %263 = vector.broadcast %cst_73 : f32 to vector<16x128xf32>
    %264 = arith.mulf %263, %262 : vector<16x128xf32>
    %265 = arith.mulf %252, %264 : vector<16x128xf32>
    %266 = arith.truncf %265 : vector<16x128xf32> to vector<16x128xbf16>
    %267 = vector.extract_strided_slice %147 {offsets = [0, 0], sizes = [128, 32], strides = [1, 1]} : vector<129x32xbf16> to vector<128x32xbf16>
    %cst_74 = arith.constant dense<0.000000e+00> : vector<16x32xf32>
    %268 = tpu.matmul %266, %267, %cst_74 {dimension_numbers = #tpu.dot_dimension_numbers<[1], [0], [0], [1], [0, 0, 1, 1], [], []>} : vector<16x128xbf16>, vector<128x32xbf16>, vector<16x32xf32> -> vector<16x32xf32>
    %269 = vector.extract_strided_slice %147 {offsets = [128, 0], sizes = [1, 32], strides = [1, 1]} : vector<129x32xbf16> to vector<1x32xbf16>
    %270 = arith.extf %269 : vector<1x32xbf16> to vector<1x32xf32>
    %271 = vector.broadcast %270 : vector<1x32xf32> to vector<16x32xf32>
    %272 = arith.addf %268, %271 : vector<16x32xf32>
    %273 = arith.addf %221, %272 : vector<16x32xf32>
    %c2 = arith.constant 2 : index
    %c0_75 = arith.constant 0 : index
    %c0_76 = arith.constant 0 : index
    %274 = vector.load %arg2[%c2, %c0_75, %c0_76] : memref<3x4x32xf32, #tpu.memory_space<vmem>>, vector<1x4x32xf32>
    %275 = vector.shape_cast %274 : vector<1x4x32xf32> to vector<4x32xf32>
    %276 = vector.extract_strided_slice %275 {offsets = [0, 0], sizes = [1, 32], strides = [1, 1]} : vector<4x32xf32> to vector<1x32xf32>
    %277 = vector.extract_strided_slice %275 {offsets = [1, 0], sizes = [1, 32], strides = [1, 1]} : vector<4x32xf32> to vector<1x32xf32>
    %cst_77 = arith.constant dense<0.000000e+00> : vector<16xf32>
    %278 = vector.multi_reduction <add>, %273, %cst_77 [1] : vector<16x32xf32> to vector<16xf32>
    %279 = vector.shape_cast %278 : vector<16xf32> to vector<16x1xf32>
    %cst_78 = arith.constant 3.200000e+01 : f32
    %280 = vector.broadcast %cst_78 : f32 to vector<16x1xf32>
    %281 = arith.divf %279, %280 : vector<16x1xf32>
    %282 = arith.mulf %273, %273 : vector<16x32xf32>
    %cst_79 = arith.constant dense<0.000000e+00> : vector<16xf32>
    %283 = vector.multi_reduction <add>, %282, %cst_79 [1] : vector<16x32xf32> to vector<16xf32>
    %284 = vector.shape_cast %283 : vector<16xf32> to vector<16x1xf32>
    %cst_80 = arith.constant 3.200000e+01 : f32
    %285 = vector.broadcast %cst_80 : f32 to vector<16x1xf32>
    %286 = arith.divf %284, %285 : vector<16x1xf32>
    %287 = arith.mulf %281, %281 : vector<16x1xf32>
    %288 = arith.subf %286, %287 : vector<16x1xf32>
    %289 = vector.broadcast %281 : vector<16x1xf32> to vector<16x32xf32>
    %290 = arith.subf %273, %289 : vector<16x32xf32>
    %cst_81 = arith.constant 9.99999974E-6 : f32
    %291 = vector.broadcast %cst_81 : f32 to vector<16x1xf32>
    %292 = arith.addf %288, %291 : vector<16x1xf32>
    %293 = math.rsqrt %292 : vector<16x1xf32>
    %294 = vector.broadcast %293 : vector<16x1xf32> to vector<16x32xf32>
    %295 = arith.mulf %290, %294 : vector<16x32xf32>
    %296 = vector.broadcast %276 : vector<1x32xf32> to vector<16x32xf32>
    %297 = arith.mulf %295, %296 : vector<16x32xf32>
    %298 = vector.broadcast %277 : vector<1x32xf32> to vector<16x32xf32>
    %299 = arith.addf %297, %298 : vector<16x32xf32>
    %300 = arith.truncf %299 : vector<16x32xf32> to vector<16x32xbf16>
    %c0_82 = arith.constant 0 : index
    %c0_83 = arith.constant 0 : index
    %301 = vector.load %arg7[%c0_82, %c0_83] : memref<32x128xbf16, #tpu.memory_space<vmem>>, vector<32x128xbf16>
    %cst_84 = arith.constant dense<0.000000e+00> : vector<16x128xf32>
    %302 = tpu.matmul %300, %301, %cst_84 {dimension_numbers = #tpu.dot_dimension_numbers<[1], [0], [0], [1], [0, 0, 1, 1], [], []>} : vector<16x32xbf16>, vector<32x128xbf16>, vector<16x128xf32> -> vector<16x128xf32>
    %c0_85 = arith.constant 0 : index
    %c0_86 = arith.constant 0 : index
    %303 = vector.load %arg8[%c0_85, %c0_86] : memref<16x128xf32, #tpu.memory_space<vmem>>, vector<16x128xf32>
    tpu.vector_store %arg8[%c0_85, %c0_86], %302 {strides = array<i32>} : memref<16x128xf32, #tpu.memory_space<vmem>>, vector<16x128xf32>,
    return
  }
}

</mosaic_0001>

<llo_original>
// kernel: tile.8
$region0: #{tile.8}
  #allocation0 [shape = 's32[1]{0}', space=sflag, size = 0x4, scoped, tag = 'scoped memory for tile.8']
  %s0 = inlined_call_operand.vmem [shape: f32[16,16], index: 0, kind: input, shape index: {}]
  %s1 = inlined_call_operand.vmem [shape: f32[4,16,4,16], index: 1, kind: output, shape index: {}]
  // Predicated region
  $region2: #{tile.8} parent=0 // pred_check
    _
  $region3: #{tile.8} parent=0 // pred_check_branch
    %3 = sbr.rel (0) target = $region5
  $region4: #{tile.8} parent=0 // pred_region
    _
  $region5: #{tile.8} parent=0 // pred_fallthru
    _
  %v4 = vld [vmem:[%s0] ss:$0 sm:$0xff]
  %5 = vst [vmem:[%s1] sm:$0xf] %v4
  %s6 = scalar_lea.vmem %s1, 64
  %7 = vst [vmem:[%s6] sm:$0xf] %v4
  %s8 = scalar_lea.vmem %s1, 128
  %9 = vst [vmem:[%s8] sm:$0xf] %v4
  %s10 = scalar_lea.vmem %s1, 192
  %11 = vst [vmem:[%s10] sm:$0xf] %v4
  %s12 = scalar_lea.vmem %s0, 1
  %v13 = vld [vmem:[%s12] ss:$0 sm:$0xff]
  %s14 = scalar_lea.vmem %s1, 4
  %15 = vst [vmem:[%s14] sm:$0xf] %v13
  %s16 = scalar_lea.vmem %s1, 68
  %17 = vst [vmem:[%s16] sm:$0xf] %v13
  %s18 = scalar_lea.vmem %s1, 132
  %19 = vst [vmem:[%s18] sm:$0xf] %v13
  %s20 = scalar_lea.vmem %s1, 196
  %21 = vst [vmem:[%s20] sm:$0xf] %v13
  %s22 = scalar_lea.vmem %s0, 2
  %v23 = vld [vmem:[%s22] ss:$0 sm:$0xff]
  %s24 = scalar_lea.vmem %s1, 8
  %25 = vst [vmem:[%s24] sm:$0xf] %v23
  %s26 = scalar_lea.vmem %s1, 72
  %27 = vst [vmem:[%s26] sm:$0xf] %v23
  %s28 = scalar_lea.vmem %s1, 136
  %29 = vst [vmem:[%s28] sm:$0xf] %v23
  %s30 = scalar_lea.vmem %s1, 200
  %31 = vst [vmem:[%s30] sm:$0xf] %v23
  %s32 = scalar_lea.vmem %s0, 3
  %v33 = vld [vmem:[%s32] ss:$0 sm:$0xff]
  %s34 = scalar_lea.vmem %s1, 12
  %35 = vst [vmem:[%s34] sm:$0xf] %v33
  %s36 = scalar_lea.vmem %s1, 76
  %37 = vst [vmem:[%s36] sm:$0xf] %v33
  %s38 = scalar_lea.vmem %s1, 140
  %39 = vst [vmem:[%s38] sm:$0xf] %v33
  %s40 = scalar_lea.vmem %s1, 204
  %41 = vst [vmem:[%s40] sm:$0xf] %v33
  %s42 = scalar_lea.vmem %s0, 4
  %v43 = vld [vmem:[%s42] ss:$0 sm:$0xff]
  %s44 = scalar_lea.vmem %s1, 16
  %45 = vst [vmem:[%s44] sm:$0xf] %v43
  %s46 = scalar_lea.vmem %s1, 80
  %47 = vst [vmem:[%s46] sm:$0xf] %v43
  %s48 = scalar_lea.vmem %s1, 144
  %49 = vst [vmem:[%s48] sm:$0xf] %v43
  %s50 = scalar_lea.vmem %s1, 208
  %51 = vst [vmem:[%s50] sm:$0xf] %v43
  %s52 = scalar_lea.vmem %s0, 5
  %v53 = vld [vmem:[%s52] ss:$0 sm:$0xff]
  %s54 = scalar_lea.vmem %s1, 20
  %55 = vst [vmem:[%s54] sm:$0xf] %v53
  %s56 = scalar_lea.vmem %s1, 84
  %57 = vst [vmem:[%s56] sm:$0xf] %v53
  %s58 = scalar_lea.vmem %s1, 148
  %59 = vst [vmem:[%s58] sm:$0xf] %v53
  %s60 = scalar_lea.vmem %s1, 212
  %61 = vst [vmem:[%s60] sm:$0xf] %v53
  %s62 = scalar_lea.vmem %s0, 6
  %v63 = vld [vmem:[%s62] ss:$0 sm:$0xff]
  %s64 = scalar_lea.vmem %s1, 24
  %65 = vst [vmem:[%s64] sm:$0xf] %v63
  %s66 = scalar_lea.vmem %s1, 88
  %67 = vst [vmem:[%s66] sm:$0xf] %v63
  %s68 = scalar_lea.vmem %s1, 152
  %69 = vst [vmem:[%s68] sm:$0xf] %v63
  %s70 = scalar_lea.vmem %s1, 216
  %71 = vst [vmem:[%s70] sm:$0xf] %v63
  %s72 = scalar_lea.vmem %s0, 7
  %v73 = vld [vmem:[%s72] ss:$0 sm:$0xff]
  %s74 = scalar_lea.vmem %s1, 28
  %75 = vst [vmem:[%s74] sm:$0xf] %v73
  %s76 = scalar_lea.vmem %s1, 92
  %77 = vst [vmem:[%s76] sm:$0xf] %v73
  %s78 = scalar_lea.vmem %s1, 156
  %79 = vst [vmem:[%s78] sm:$0xf] %v73
  %s80 = scalar_lea.vmem %s1, 220
  %81 = vst [vmem:[%s80] sm:$0xf] %v73
  %s82 = scalar_lea.vmem %s0, 8
  %v83 = vld [vmem:[%s82] ss:$0 sm:$0xff]
  %s84 = scalar_lea.vmem %s1, 32
  %85 = vst [vmem:[%s84] sm:$0xf] %v83
  %s86 = scalar_lea.vmem %s1, 96
  %87 = vst [vmem:[%s86] sm:$0xf] %v83
  %s88 = scalar_lea.vmem %s1, 160
  %89 = vst [vmem:[%s88] sm:$0xf] %v83
  %s90 = scalar_lea.vmem %s1, 224
  %91 = vst [vmem:[%s90] sm:$0xf] %v83
  %s92 = scalar_lea.vmem %s0, 8
  %s93 = scalar_lea.vmem %s92, 1
  %v94 = vld [vmem:[%s93] ss:$0 sm:$0xff]
  %s95 = scalar_lea.vmem %s1, 36
  %96 = vst [vmem:[%s95] sm:$0xf] %v94
  %s97 = scalar_lea.vmem %s1, 100
  %98 = vst [vmem:[%s97] sm:$0xf] %v94
  %s99 = scalar_lea.vmem %s1, 164
  %100 = vst [vmem:[%s99] sm:$0xf] %v94
  %s101 = scalar_lea.vmem %s1, 228
  %102 = vst [vmem:[%s101] sm:$0xf] %v94
  %s103 = scalar_lea.vmem %s0, 8
  %s104 = scalar_lea.vmem %s103, 2
  %v105 = vld [vmem:[%s104] ss:$0 sm:$0xff]
  %s106 = scalar_lea.vmem %s1, 40
  %107 = vst [vmem:[%s106] sm:$0xf] %v105
  %s108 = scalar_lea.vmem %s1, 104
  %109 = vst [vmem:[%s108] sm:$0xf] %v105
  %s110 = scalar_lea.vmem %s1, 168
  %111 = vst [vmem:[%s110] sm:$0xf] %v105
  %s112 = scalar_lea.vmem %s1, 232
  %113 = vst [vmem:[%s112] sm:$0xf] %v105
  %s114 = scalar_lea.vmem %s0, 8
  %s115 = scalar_lea.vmem %s114, 3
  %v116 = vld [vmem:[%s115] ss:$0 sm:$0xff]
  %s117 = scalar_lea.vmem %s1, 44
  %118 = vst [vmem:[%s117] sm:$0xf] %v116
  %s119 = scalar_lea.vmem %s1, 108
  %120 = vst [vmem:[%s119] sm:$0xf] %v116
  %s121 = scalar_lea.vmem %s1, 172
  %122 = vst [vmem:[%s121] sm:$0xf] %v116
  %s123 = scalar_lea.vmem %s1, 236
  %124 = vst [vmem:[%s123] sm:$0xf] %v116
  %s125 = scalar_lea.vmem %s0, 8
  %s126 = scalar_lea.vmem %s125, 4
  %v127 = vld [vmem:[%s126] ss:$0 sm:$0xff]
  %s128 = scalar_lea.vmem %s1, 48
  %129 = vst [vmem:[%s128] sm:$0xf] %v127
  %s130 = scalar_lea.vmem %s1, 112
  %131 = vst [vmem:[%s130] sm:$0xf] %v127
  %s132 = scalar_lea.vmem %s1, 176
  %133 = vst [vmem:[%s132] sm:$0xf] %v127
  %s134 = scalar_lea.vmem %s1, 240
  %135 = vst [vmem:[%s134] sm:$0xf] %v127
  %s136 = scalar_lea.vmem %s0, 8
  %s137 = scalar_lea.vmem %s136, 5
  %v138 = vld [vmem:[%s137] ss:$0 sm:$0xff]
  %s139 = scalar_lea.vmem %s1, 52
  %140 = vst [vmem:[%s139] sm:$0xf] %v138
  %s141 = scalar_lea.vmem %s1, 116
  %142 = vst [vmem:[%s141] sm:$0xf] %v138
  %s143 = scalar_lea.vmem %s1, 180
  %144 = vst [vmem:[%s143] sm:$0xf] %v138
  %s145 = scalar_lea.vmem %s1, 244
  %146 = vst [vmem:[%s145] sm:$0xf] %v138
  %s147 = scalar_lea.vmem %s0, 8
  %s148 = scalar_lea.vmem %s147, 6
  %v149 = vld [vmem:[%s148] ss:$0 sm:$0xff]
  %s150 = scalar_lea.vmem %s1, 56
  %151 = vst [vmem:[%s150] sm:$0xf] %v149
  %s152 = scalar_lea.vmem %s1, 120
  %153 = vst [vmem:[%s152] sm:$0xf] %v149
  %s154 = scalar_lea.vmem %s1, 184
  %155 = vst [vmem:[%s154] sm:$0xf] %v149
  %s156 = scalar_lea.vmem %s1, 248
  %157 = vst [vmem:[%s156] sm:$0xf] %v149
  %s158 = scalar_lea.vmem %s0, 8
  %s159 = scalar_lea.vmem %s158, 7
  %v160 = vld [vmem:[%s159] ss:$0 sm:$0xff]
  %s161 = scalar_lea.vmem %s1, 60
  %162 = vst [vmem:[%s161] sm:$0xf] %v160
  %s163 = scalar_lea.vmem %s1, 124
  %164 = vst [vmem:[%s163] sm:$0xf] %v160
  %s165 = scalar_lea.vmem %s1, 188
  %166 = vst [vmem:[%s165] sm:$0xf] %v160
  %s167 = scalar_lea.vmem %s1, 252
  %168 = vst [vmem:[%s167] sm:$0xf] %v160

// kernel: tile.9
$region0: #{tile.9}
  %s0 = inlined_call_operand.vmem [shape: f32[4,16,4,16], index: 0, kind: input, shape index: {}]
  %s1 = inlined_call_operand.vmem [shape: f32[64,64], index: 1, kind: output, shape index: {}]
  $region1: #{tile.9} parent=0
    #allocation0 [shape = 'u8[262144]{0}', space=vmem, size = 0x40000, scoped, tag = 'scoped mem for input reshape']
    %s3 = ssub.s32 16, 1
    %s4 = scalar_lea.vmem %s0, 252
    %v5 = vld [vmem:[%s4] sm:%s3]
    %s6 = scalar_lea.vmem [#allocation0], 504
    %7 = vst [vmem:[%s6] sm:%s3] %v5
    %s8 = scalar_lea.vmem %s0, 248
    %v9 = vld [vmem:[%s8] sm:%s3]
    %s10 = scalar_lea.vmem [#allocation0], 496
    %11 = vst [vmem:[%s10] sm:%s3] %v9
    %s12 = scalar_lea.vmem %s0, 244
    %v13 = vld [vmem:[%s12] sm:%s3]
    %s14 = scalar_lea.vmem [#allocation0], 488
    %15 = vst [vmem:[%s14] sm:%s3] %v13
    %s16 = scalar_lea.vmem %s0, 240
    %v17 = vld [vmem:[%s16] sm:%s3]
    %s18 = scalar_lea.vmem [#allocation0], 480
    %19 = vst [vmem:[%s18] sm:%s3] %v17
    %s20 = scalar_lea.vmem %s0, 236
    %v21 = vld [vmem:[%s20] sm:%s3]
    %s22 = scalar_lea.vmem [#allocation0], 472
    %23 = vst [vmem:[%s22] sm:%s3] %v21
    %s24 = scalar_lea.vmem %s0, 232
    %v25 = vld [vmem:[%s24] sm:%s3]
    %s26 = scalar_lea.vmem [#allocation0], 464
    %27 = vst [vmem:[%s26] sm:%s3] %v25
    %s28 = scalar_lea.vmem %s0, 228
    %v29 = vld [vmem:[%s28] sm:%s3]
    %s30 = scalar_lea.vmem [#allocation0], 456
    %31 = vst [vmem:[%s30] sm:%s3] %v29
    %s32 = scalar_lea.vmem %s0, 224
    %v33 = vld [vmem:[%s32] sm:%s3]
    %s34 = scalar_lea.vmem [#allocation0], 448
    %35 = vst [vmem:[%s34] sm:%s3] %v33
    %s36 = scalar_lea.vmem %s0, 220
    %v37 = vld [vmem:[%s36] sm:%s3]
    %s38 = scalar_lea.vmem [#allocation0], 440
    %39 = vst [vmem:[%s38] sm:%s3] %v37
    %s40 = scalar_lea.vmem %s0, 216
    %v41 = vld [vmem:[%s40] sm:%s3]
    %s42 = scalar_lea.vmem [#allocation0], 432
    %43 = vst [vmem:[%s42] sm:%s3] %v41
    %s44 = scalar_lea.vmem %s0, 212
    %v45 = vld [vmem:[%s44] sm:%s3]
    %s46 = scalar_lea.vmem [#allocation0], 424
    %47 = vst [vmem:[%s46] sm:%s3] %v45
    %s48 = scalar_lea.vmem %s0, 208
    %v49 = vld [vmem:[%s48] sm:%s3]
    %s50 = scalar_lea.vmem [#allocation0], 416
    %51 = vst [vmem:[%s50] sm:%s3] %v49
    %s52 = scalar_lea.vmem %s0, 204
    %v53 = vld [vmem:[%s52] sm:%s3]
    %s54 = scalar_lea.vmem [#allocation0], 408
    %55 = vst [vmem:[%s54] sm:%s3] %v53
    %s56 = scalar_lea.vmem %s0, 200
    %v57 = vld [vmem:[%s56] sm:%s3]
    %s58 = scalar_lea.vmem [#allocation0], 400
    %59 = vst [vmem:[%s58] sm:%s3] %v57
    %s60 = scalar_lea.vmem %s0, 196
    %v61 = vld [vmem:[%s60] sm:%s3]
    %s62 = scalar_lea.vmem [#allocation0], 392
    %63 = vst [vmem:[%s62] sm:%s3] %v61
    %s64 = scalar_lea.vmem %s0, 192
    %v65 = vld [vmem:[%s64] sm:%s3]
    %s66 = scalar_lea.vmem [#allocation0], 384
    %67 = vst [vmem:[%s66] sm:%s3] %v65
    %s68 = scalar_lea.vmem %s0, 188
    %v69 = vld [vmem:[%s68] sm:%s3]
    %s70 = scalar_lea.vmem [#allocation0], 376
    %71 = vst [vmem:[%s70] sm:%s3] %v69
    %s72 = scalar_lea.vmem %s0, 184
    %v73 = vld [vmem:[%s72] sm:%s3]
    %s74 = scalar_lea.vmem [#allocation0], 368
    %75 = vst [vmem:[%s74] sm:%s3] %v73
    %s76 = scalar_lea.vmem %s0, 180
    %v77 = vld [vmem:[%s76] sm:%s3]
    %s78 = scalar_lea.vmem [#allocation0], 360
    %79 = vst [vmem:[%s78] sm:%s3] %v77
    %s80 = scalar_lea.vmem %s0, 176
    %v81 = vld [vmem:[%s80] sm:%s3]
    %s82 = scalar_lea.vmem [#allocation0], 352
    %83 = vst [vmem:[%s82] sm:%s3] %v81
    %s84 = scalar_lea.vmem %s0, 172
    %v85 = vld [vmem:[%s84] sm:%s3]
    %s86 = scalar_lea.vmem [#allocation0], 344
    %87 = vst [vmem:[%s86] sm:%s3] %v85
    %s88 = scalar_lea.vmem %s0, 168
    %v89 = vld [vmem:[%s88] sm:%s3]
    %s90 = scalar_lea.vmem [#allocation0], 336
    %91 = vst [vmem:[%s90] sm:%s3] %v89
    %s92 = scalar_lea.vmem %s0, 164
    %v93 = vld [vmem:[%s92] sm:%s3]
    %s94 = scalar_lea.vmem [#allocation0], 328
    %95 = vst [vmem:[%s94] sm:%s3] %v93
    %s96 = scalar_lea.vmem %s0, 160
    %v97 = vld [vmem:[%s96] sm:%s3]
    %s98 = scalar_lea.vmem [#allocation0], 320
    %99 = vst [vmem:[%s98] sm:%s3] %v97
    %s100 = scalar_lea.vmem %s0, 156
    %v101 = vld [vmem:[%s100] sm:%s3]
    %s102 = scalar_lea.vmem [#allocation0], 312
    %103 = vst [vmem:[%s102] sm:%s3] %v101
    %s104 = scalar_lea.vmem %s0, 152
    %v105 = vld [vmem:[%s104] sm:%s3]
    %s106 = scalar_lea.vmem [#allocation0], 304
    %107 = vst [vmem:[%s106] sm:%s3] %v105
    %s108 = scalar_lea.vmem %s0, 148
    %v109 = vld [vmem:[%s108] sm:%s3]
    %s110 = scalar_lea.vmem [#allocation0], 296
    %111 = vst [vmem:[%s110] sm:%s3] %v109
    %s112 = scalar_lea.vmem %s0, 144
    %v113 = vld [vmem:[%s112] sm:%s3]
    %s114 = scalar_lea.vmem [#allocation0], 288
    %115 = vst [vmem:[%s114] sm:%s3] %v113
    %s116 = scalar_lea.vmem %s0, 140
    %v117 = vld [vmem:[%s116] sm:%s3]
    %s118 = scalar_lea.vmem [#allocation0], 280
    %119 = vst [vmem:[%s118] sm:%s3] %v117
    %s120 = scalar_lea.vmem %s0, 136
    %v121 = vld [vmem:[%s120] sm:%s3]
    %s122 = scalar_lea.vmem [#allocation0], 272
    %123 = vst [vmem:[%s122] sm:%s3] %v121
    %s124 = scalar_lea.vmem %s0, 132
    %v125 = vld [vmem:[%s124] sm:%s3]
    %s126 = scalar_lea.vmem [#allocation0], 264
    %127 = vst [vmem:[%s126] sm:%s3] %v125
    %s128 = scalar_lea.vmem %s0, 128
    %v129 = vld [vmem:[%s128] sm:%s3]
    %s130 = scalar_lea.vmem [#allocation0], 256
    %131 = vst [vmem:[%s130] sm:%s3] %v129
    %s132 = scalar_lea.vmem %s0, 124
    %v133 = vld [vmem:[%s132] sm:%s3]
    %s134 = scalar_lea.vmem [#allocation0], 248
    %135 = vst [vmem:[%s134] sm:%s3] %v133
    %s136 = scalar_lea.vmem %s0, 120
    %v137 = vld [vmem:[%s136] sm:%s3]
    %s138 = scalar_lea.vmem [#allocation0], 240
    %139 = vst [vmem:[%s138] sm:%s3] %v137
    %s140 = scalar_lea.vmem %s0, 116
    %v141 = vld [vmem:[%s140] sm:%s3]
    %s142 = scalar_lea.vmem [#allocation0], 232
    %143 = vst [vmem:[%s142] sm:%s3] %v141
    %s144 = scalar_lea.vmem %s0, 112
    %v145 = vld [vmem:[%s144] sm:%s3]
    %s146 = scalar_lea.vmem [#allocation0], 224
    %147 = vst [vmem:[%s146] sm:%s3] %v145
    %s148 = scalar_lea.vmem %s0, 108
    %v149 = vld [vmem:[%s148] sm:%s3]
    %s150 = scalar_lea.vmem [#allocation0], 216
    %151 = vst [vmem:[%s150] sm:%s3] %v149
    %s152 = scalar_lea.vmem %s0, 104
    %v153 = vld [vmem:[%s152] sm:%s3]
    %s154 = scalar_lea.vmem [#allocation0], 208
    %155 = vst [vmem:[%s154] sm:%s3] %v153
    %s156 = scalar_lea.vmem %s0, 100
    %v157 = vld [vmem:[%s156] sm:%s3]
    %s158 = scalar_lea.vmem [#allocation0], 200
    %159 = vst [vmem:[%s158] sm:%s3] %v157
    %s160 = scalar_lea.vmem %s0, 96
    %v161 = vld [vmem:[%s160] sm:%s3]
    %s162 = scalar_lea.vmem [#allocation0], 192
    %163 = vst [vmem:[%s162] sm:%s3] %v161
    %s164 = scalar_lea.vmem %s0, 92
    %v165 = vld [vmem:[%s164] sm:%s3]
    %s166 = scalar_lea.vmem [#allocation0], 184
    %167 = vst [vmem:[%s166] sm:%s3] %v165
    %s168 = scalar_lea.vmem %s0, 88
    %v169 = vld [vmem:[%s168] sm:%s3]
    %s170 = scalar_lea.vmem [#allocation0], 176
    %171 = vst [vmem:[%s170] sm:%s3] %v169
    %s172 = scalar_lea.vmem %s0, 84
    %v173 = vld [vmem:[%s172] sm:%s3]
    %s174 = scalar_lea.vmem [#allocation0], 168
    %175 = vst [vmem:[%s174] sm:%s3] %v173
    %s176 = scalar_lea.vmem %s0, 80
    %v177 = vld [vmem:[%s176] sm:%s3]
    %s178 = scalar_lea.vmem [#allocation0], 160
    %179 = vst [vmem:[%s178] sm:%s3] %v177
    %s180 = scalar_lea.vmem %s0, 76
    %v181 = vld [vmem:[%s180] sm:%s3]
    %s182 = scalar_lea.vmem [#allocation0], 152
    %183 = vst [vmem:[%s182] sm:%s3] %v181
    %s184 = scalar_lea.vmem %s0, 72
    %v185 = vld [vmem:[%s184] sm:%s3]
    %s186 = scalar_lea.vmem [#allocation0], 144
    %187 = vst [vmem:[%s186] sm:%s3] %v185
    %s188 = scalar_lea.vmem %s0, 68
    %v189 = vld [vmem:[%s188] sm:%s3]
    %s190 = scalar_lea.vmem [#allocation0], 136
    %191 = vst [vmem:[%s190] sm:%s3] %v189
    %s192 = scalar_lea.vmem %s0, 64
    %v193 = vld [vmem:[%s192] sm:%s3]
    %s194 = scalar_lea.vmem [#allocation0], 128
    %195 = vst [vmem:[%s194] sm:%s3] %v193
    %s196 = scalar_lea.vmem %s0, 60
    %v197 = vld [vmem:[%s196] sm:%s3]
    %s198 = scalar_lea.vmem [#allocation0], 120
    %199 = vst [vmem:[%s198] sm:%s3] %v197
    %s200 = scalar_lea.vmem %s0, 56
    %v201 = vld [vmem:[%s200] sm:%s3]
    %s202 = scalar_lea.vmem [#allocation0], 112
    %203 = vst [vmem:[%s202] sm:%s3] %v201
    %s204 = scalar_lea.vmem %s0, 52
    %v205 = vld [vmem:[%s204] sm:%s3]
    %s206 = scalar_lea.vmem [#allocation0], 104
    %207 = vst [vmem:[%s206] sm:%s3] %v205
    %s208 = scalar_lea.vmem %s0, 48
    %v209 = vld [vmem:[%s208] sm:%s3]
    %s210 = scalar_lea.vmem [#allocation0], 96
    %211 = vst [vmem:[%s210] sm:%s3] %v209
    %s212 = scalar_lea.vmem %s0, 44
    %v213 = vld [vmem:[%s212] sm:%s3]
    %s214 = scalar_lea.vmem [#allocation0], 88
    %215 = vst [vmem:[%s214] sm:%s3] %v213
    %s216 = scalar_lea.vmem %s0, 40
    %v217 = vld [vmem:[%s216] sm:%s3]
    %s218 = scalar_lea.vmem [#allocation0], 80
    %219 = vst [vmem:[%s218] sm:%s3] %v217
    %s220 = scalar_lea.vmem %s0, 36
    %v221 = vld [vmem:[%s220] sm:%s3]
    %s222 = scalar_lea.vmem [#allocation0], 72
    %223 = vst [vmem:[%s222] sm:%s3] %v221
    %s224 = scalar_lea.vmem %s0, 32
    %v225 = vld [vmem:[%s224] sm:%s3]
    %s226 = scalar_lea.vmem [#allocation0], 64
    %227 = vst [vmem:[%s226] sm:%s3] %v225
    %s228 = scalar_lea.vmem %s0, 28
    %v229 = vld [vmem:[%s228] sm:%s3]
    %s230 = scalar_lea.vmem [#allocation0], 56
    %231 = vst [vmem:[%s230] sm:%s3] %v229
    %s232 = scalar_lea.vmem %s0, 24
    %v233 = vld [vmem:[%s232] sm:%s3]
    %s234 = scalar_lea.vmem [#allocation0], 48
    %235 = vst [vmem:[%s234] sm:%s3] %v233
    %s236 = scalar_lea.vmem %s0, 20
    %v237 = vld [vmem:[%s236] sm:%s3]
    %s238 = scalar_lea.vmem [#allocation0], 40
    %239 = vst [vmem:[%s238] sm:%s3] %v237
    %s240 = scalar_lea.vmem %s0, 16
    %v241 = vld [vmem:[%s240] sm:%s3]
    %s242 = scalar_lea.vmem [#allocation0], 32
    %243 = vst [vmem:[%s242] sm:%s3] %v241
    %s244 = scalar_lea.vmem %s0, 12
    %v245 = vld [vmem:[%s244] sm:%s3]
    %s246 = scalar_lea.vmem [#allocation0], 24
    %247 = vst [vmem:[%s246] sm:%s3] %v245
    %s248 = scalar_lea.vmem %s0, 8
    %v249 = vld [vmem:[%s248] sm:%s3]
    %s250 = scalar_lea.vmem [#allocation0], 16
    %251 = vst [vmem:[%s250] sm:%s3] %v249
    %s252 = scalar_lea.vmem %s0, 4
    %v253 = vld [vmem:[%s252] sm:%s3]
    %s254 = scalar_lea.vmem [#allocation0], 8
    %255 = vst [vmem:[%s254] sm:%s3] %v253
    %v256 = vld [vmem:[%s0] sm:%s3]
    %257 = vst [vmem:[#allocation0] sm:%s3] %v256
    %v258 = vld [vmem:[#allocation0] ss:$8 sm:$0xf]
    %v259 = vld [vmem:[#allocation0] ss:$8 sm:$0xf0]
    %vm260 = vcmask 1047556
    %v261 = vsel %vm260, %v259, %v258
    %vm262 = vcmask 130048
    %263 = vst.msk [vmem:[%s1] sm:$0xff] %vm262, %v261
    %s264 = scalar_lea.vmem [#allocation0], 64
    %v265 = vld [vmem:[%s264] ss:$8 sm:$0xf]
    %s266 = scalar_lea.vmem [#allocation0], 64
    %v267 = vld [vmem:[%s266] ss:$8 sm:$0xf0]
    %vm268 = vcmask 1047556
    %v269 = vsel %vm268, %v267, %v265
    %vm270 = vcmask 130048
    %s271 = scalar_lea.vmem %s1, 8
    %272 = vst.msk [vmem:[%s271] sm:$0xff] %vm270, %v269
    %s273 = scalar_lea.vmem [#allocation0], 128
    %v274 = vld [vmem:[%s273] ss:$8 sm:$0xf]
    %s275 = scalar_lea.vmem [#allocation0], 128
    %v276 = vld [vmem:[%s275] ss:$8 sm:$0xf0]
    %vm277 = vcmask 1047556
    %v278 = vsel %vm277, %v276, %v274
    %vm279 = vcmask 130048
    %s280 = scalar_lea.vmem %s1, 16
    %281 = vst.msk [vmem:[%s280] sm:$0xff] %vm279, %v278
    %s282 = scalar_lea.vmem [#allocation0], 192
    %v283 = vld [vmem:[%s282] ss:$8 sm:$0xf]
    %s284 = scalar_lea.vmem [#allocation0], 192
    %v285 = vld [vmem:[%s284] ss:$8 sm:$0xf0]
    %vm286 = vcmask 1047556
    %v287 = vsel %vm286, %v285, %v283
    %vm288 = vcmask 130048
    %s289 = scalar_lea.vmem %s1, 24
    %290 = vst.msk [vmem:[%s289] sm:$0xff] %vm288, %v287
    %s291 = scalar_lea.vmem [#allocation0], 256
    %v292 = vld [vmem:[%s291] ss:$8 sm:$0xf]
    %s293 = scalar_lea.vmem [#allocation0], 256
    %v294 = vld [vmem:[%s293] ss:$8 sm:$0xf0]
    %vm295 = vcmask 1047556
    %v296 = vsel %vm295, %v294, %v292
    %vm297 = vcmask 130048
    %s298 = scalar_lea.vmem %s1, 32
    %299 = vst.msk [vmem:[%s298] sm:$0xff] %vm297, %v296
    %s300 = scalar_lea.vmem [#allocation0], 320
    %v301 = vld [vmem:[%s300] ss:$8 sm:$0xf]
    %s302 = scalar_lea.vmem [#allocation0], 320
    %v303 = vld [vmem:[%s302] ss:$8 sm:$0xf0]
    %vm304 = vcmask 1047556
    %v305 = vsel %vm304, %v303, %v301
    %vm306 = vcmask 130048
    %s307 = scalar_lea.vmem %s1, 40
    %308 = vst.msk [vmem:[%s307] sm:$0xff] %vm306, %v305
    %s309 = scalar_lea.vmem [#allocation0], 384
    %v310 = vld [vmem:[%s309] ss:$8 sm:$0xf]
    %s311 = scalar_lea.vmem [#allocation0], 384
    %v312 = vld [vmem:[%s311] ss:$8 sm:$0xf0]
    %vm313 = vcmask 1047556
    %v314 = vsel %vm313, %v312, %v310
    %vm315 = vcmask 130048
    %s316 = scalar_lea.vmem %s1, 48
    %317 = vst.msk [vmem:[%s316] sm:$0xff] %vm315, %v314
    %s318 = scalar_lea.vmem [#allocation0], 448
    %v319 = vld [vmem:[%s318] ss:$8 sm:$0xf]
    %s320 = scalar_lea.vmem [#allocation0], 448
    %v321 = vld [vmem:[%s320] ss:$8 sm:$0xf0]
    %vm322 = vcmask 1047556
    %v323 = vsel %vm322, %v321, %v319
    %vm324 = vcmask 130048
    %s325 = scalar_lea.vmem %s1, 56
    %326 = vst.msk [vmem:[%s325] sm:$0xff] %vm324, %v323
    %s327 = scalar_lea.vmem [#allocation0], 3
    %v328 = vld [vmem:[%s327] ss:$8 sm:$0xf]
    %s329 = scalar_lea.vmem [#allocation0], 3
    %v330 = vld [vmem:[%s329] ss:$8 sm:$0xf0]
    %vm331 = vcmask 1047556
    %v332 = vsel %vm331, %v330, %v328
    %333 = vrot.lane.b32.xlu0 %v332, 48
    %v334 = vpop.permute.xlu0 %333
    %vm335 = vcmask 523648
    %336 = vst.msk [vmem:[%s1] sm:$0xff] %vm335, %v334
    %s337 = scalar_lea.vmem [#allocation0], 259
    %v338 = vld [vmem:[%s337] ss:$8 sm:$0xf]
    %s339 = scalar_lea.vmem [#allocation0], 259
    %v340 = vld [vmem:[%s339] ss:$8 sm:$0xf0]
    %vm341 = vcmask 1047556
    %v342 = vsel %vm341, %v340, %v338
    %343 = vrot.lane.b32.xlu0 %v342, 48
    %v344 = vpop.permute.xlu0 %343
    %vm345 = vcmask 523648
    %s346 = scalar_lea.vmem %s1, 32
    %347 = vst.msk [vmem:[%s346] sm:$0xff] %vm345, %v344
    %s348 = scalar_lea.vmem [#allocation0], 67
    %v349 = vld [vmem:[%s348] ss:$8 sm:$0xf]
    %s350 = scalar_lea.vmem [#allocation0], 67
    %v351 = vld [vmem:[%s350] ss:$8 sm:$0xf0]
    %vm352 = vcmask 1047556
    %v353 = vsel %vm352, %v351, %v349
    %354 = vrot.lane.b32.xlu0 %v353, 48
    %v355 = vpop.permute.xlu0 %354
    %vm356 = vcmask 523648
    %s357 = scalar_lea.vmem %s1, 8
    %358 = vst.msk [vmem:[%s357] sm:$0xff] %vm356, %v355
    %s359 = scalar_lea.vmem [#allocation0], 323
    %v360 = vld [vmem:[%s359] ss:$8 sm:$0xf]
    %s361 = scalar_lea.vmem [#allocation0], 323
    %v362 = vld [vmem:[%s361] ss:$8 sm:$0xf0]
    %vm363 = vcmask 1047556
    %v364 = vsel %vm363, %v362, %v360
    %365 = vrot.lane.b32.xlu0 %v364, 48
    %v366 = vpop.permute.xlu0 %365
    %vm367 = vcmask 523648
    %s368 = scalar_lea.vmem %s1, 40
    %369 = vst.msk [vmem:[%s368] sm:$0xff] %vm367, %v366
    %s370 = scalar_lea.vmem [#allocation0], 131
    %v371 = vld [vmem:[%s370] ss:$8 sm:$0xf]
    %s372 = scalar_lea.vmem [#allocation0], 131
    %v373 = vld [vmem:[%s372] ss:$8 sm:$0xf0]
    %vm374 = vcmask 1047556
    %v375 = vsel %vm374, %v373, %v371
    %376 = vrot.lane.b32.xlu0 %v375, 48
    %v377 = vpop.permute.xlu0 %376
    %vm378 = vcmask 523648
    %s379 = scalar_lea.vmem %s1, 16
    %380 = vst.msk [vmem:[%s379] sm:$0xff] %vm378, %v377
    %s381 = scalar_lea.vmem [#allocation0], 387
    %v382 = vld [vmem:[%s381] ss:$8 sm:$0xf]
    %s383 = scalar_lea.vmem [#allocation0], 387
    %v384 = vld [vmem:[%s383] ss:$8 sm:$0xf0]
    %vm385 = vcmask 1047556
    %v386 = vsel %vm385, %v384, %v382
    %387 = vrot.lane.b32.xlu0 %v386, 48
    %v388 = vpop.permute.xlu0 %387
    %vm389 = vcmask 523648
    %s390 = scalar_lea.vmem %s1, 48
    %391 = vst.msk [vmem:[%s390] sm:$0xff] %vm389, %v388
    %s392 = scalar_lea.vmem [#allocation0], 195
    %v393 = vld [vmem:[%s392] ss:$8 sm:$0xf]
    %s394 = scalar_lea.vmem [#allocation0], 195
    %v395 = vld [vmem:[%s394] ss:$8 sm:$0xf0]
    %vm396 = vcmask 1047556
    %v397 = vsel %vm396, %v395, %v393
    %398 = vrot.lane.b32.xlu0 %v397, 48
    %v399 = vpop.permute.xlu0 %398
    %vm400 = vcmask 523648
    %s401 = scalar_lea.vmem %s1, 24
    %402 = vst.msk [vmem:[%s401] sm:$0xff] %vm400, %v399
    %s403 = scalar_lea.vmem [#allocation0], 451
    %v404 = vld [vmem:[%s403] ss:$8 sm:$0xf]
    %s405 = scalar_lea.vmem [#allocation0], 451
    %v406 = vld [vmem:[%s405] ss:$8 sm:$0xf0]
    %vm407 = vcmask 1047556
    %v408 = vsel %vm407, %v406, %v404
    %409 = vrot.lane.b32.xlu0 %v408, 48
    %v410 = vpop.permute.xlu0 %409
    %vm411 = vcmask 523648
    %s412 = scalar_lea.vmem %s1, 56
    %413 = vst.msk [vmem:[%s412] sm:$0xff] %vm411, %v410
    %s414 = scalar_lea.vmem [#allocation0], 2
    %v415 = vld [vmem:[%s414] ss:$8 sm:$0xf]
    %s416 = scalar_lea.vmem [#allocation0], 2
    %v417 = vld [vmem:[%s416] ss:$8 sm:$0xf0]
    %vm418 = vcmask 1047556
    %v419 = vsel %vm418, %v417, %v415
    %420 = vrot.lane.b32.xlu0 %v419, 32
    %v421 = vpop.permute.xlu0 %420
    %vm422 = vcmask 392448
    %423 = vst.msk [vmem:[%s1] sm:$0xff] %vm422, %v421
    %s424 = scalar_lea.vmem [#allocation0], 258
    %v425 = vld [vmem:[%s424] ss:$8 sm:$0xf]
    %s426 = scalar_lea.vmem [#allocation0], 258
    %v427 = vld [vmem:[%s426] ss:$8 sm:$0xf0]
    %vm428 = vcmask 1047556
    %v429 = vsel %vm428, %v427, %v425
    %430 = vrot.lane.b32.xlu0 %v429, 32
    %v431 = vpop.permute.xlu0 %430
    %vm432 = vcmask 392448
    %s433 = scalar_lea.vmem %s1, 32
    %434 = vst.msk [vmem:[%s433] sm:$0xff] %vm432, %v431
    %s435 = scalar_lea.vmem [#allocation0], 66
    %v436 = vld [vmem:[%s435] ss:$8 sm:$0xf]
    %s437 = scalar_lea.vmem [#allocation0], 66
    %v438 = vld [vmem:[%s437] ss:$8 sm:$0xf0]
    %vm439 = vcmask 1047556
    %v440 = vsel %vm439, %v438, %v436
    %441 = vrot.lane.b32.xlu0 %v440, 32
    %v442 = vpop.permute.xlu0 %441
    %vm443 = vcmask 392448
    %s444 = scalar_lea.vmem %s1, 8
    %445 = vst.msk [vmem:[%s444] sm:$0xff] %vm443, %v442
    %s446 = scalar_lea.vmem [#allocation0], 322
    %v447 = vld [vmem:[%s446] ss:$8 sm:$0xf]
    %s448 = scalar_lea.vmem [#allocation0], 322
    %v449 = vld [vmem:[%s448] ss:$8 sm:$0xf0]
    %vm450 = vcmask 1047556
    %v451 = vsel %vm450, %v449, %v447
    %452 = vrot.lane.b32.xlu0 %v451, 32
    %v453 = vpop.permute.xlu0 %452
    %vm454 = vcmask 392448
    %s455 = scalar_lea.vmem %s1, 40
    %456 = vst.msk [vmem:[%s455] sm:$0xff] %vm454, %v453
    %s457 = scalar_lea.vmem [#allocation0], 130
    %v458 = vld [vmem:[%s457] ss:$8 sm:$0xf]
    %s459 = scalar_lea.vmem [#allocation0], 130
    %v460 = vld [vmem:[%s459] ss:$8 sm:$0xf0]
    %vm461 = vcmask 1047556
    %v462 = vsel %vm461, %v460, %v458
    %463 = vrot.lane.b32.xlu0 %v462, 32
    %v464 = vpop.permute.xlu0 %463
    %vm465 = vcmask 392448
    %s466 = scalar_lea.vmem %s1, 16
    %467 = vst.msk [vmem:[%s466] sm:$0xff] %vm465, %v464
    %s468 = scalar_lea.vmem [#allocation0], 386
    %v469 = vld [vmem:[%s468] ss:$8 sm:$0xf]
    %s470 = scalar_lea.vmem [#allocation0], 386
    %v471 = vld [vmem:[%s470] ss:$8 sm:$0xf0]
    %vm472 = vcmask 1047556
    %v473 = vsel %vm472, %v471, %v469
    %474 = vrot.lane.b32.xlu0 %v473, 32
    %v475 = vpop.permute.xlu0 %474
    %vm476 = vcmask 392448
    %s477 = scalar_lea.vmem %s1, 48
    %478 = vst.msk [vmem:[%s477] sm:$0xff] %vm476, %v475
    %s479 = scalar_lea.vmem [#allocation0], 194
    %v480 = vld [vmem:[%s479] ss:$8 sm:$0xf]
    %s481 = scalar_lea.vmem [#allocation0], 194
    %v482 = vld [vmem:[%s481] ss:$8 sm:$0xf0]
    %vm483 = vcmask 1047556
    %v484 = vsel %vm483, %v482, %v480
    %485 = vrot.lane.b32.xlu0 %v484, 32
    %v486 = vpop.permute.xlu0 %485
    %vm487 = vcmask 392448
    %s488 = scalar_lea.vmem %s1, 24
    %489 = vst.msk [vmem:[%s488] sm:$0xff] %vm487, %v486
    %s490 = scalar_lea.vmem [#allocation0], 450
    %v491 = vld [vmem:[%s490] ss:$8 sm:$0xf]
    %s492 = scalar_lea.vmem [#allocation0], 450
    %v493 = vld [vmem:[%s492] ss:$8 sm:$0xf0]
    %vm494 = vcmask 1047556
    %v495 = vsel %vm494, %v493, %v491
    %496 = vrot.lane.b32.xlu0 %v495, 32
    %v497 = vpop.permute.xlu0 %496
    %vm498 = vcmask 392448
    %s499 = scalar_lea.vmem %s1, 56
    %500 = vst.msk [vmem:[%s499] sm:$0xff] %vm498, %v497
    %s501 = scalar_lea.vmem [#allocation0], 1
    %v502 = vld [vmem:[%s501] ss:$8 sm:$0xf]
    %s503 = scalar_lea.vmem [#allocation0], 1
    %v504 = vld [vmem:[%s503] ss:$8 sm:$0xf0]
    %vm505 = vcmask 1047556
    %v506 = vsel %vm505, %v504, %v502
    %507 = vrot.lane.b32.xlu0 %v506, 16
    %v508 = vpop.permute.xlu0 %507
    %vm509 = vcmask 261248
    %510 = vst.msk [vmem:[%s1] sm:$0xff] %vm509, %v508
    %s511 = scalar_lea.vmem [#allocation0], 257
    %v512 = vld [vmem:[%s511] ss:$8 sm:$0xf]
    %s513 = scalar_lea.vmem [#allocation0], 257
    %v514 = vld [vmem:[%s513] ss:$8 sm:$0xf0]
    %vm515 = vcmask 1047556
    %v516 = vsel %vm515, %v514, %v512
    %517 = vrot.lane.b32.xlu0 %v516, 16
    %v518 = vpop.permute.xlu0 %517
    %vm519 = vcmask 261248
    %s520 = scalar_lea.vmem %s1, 32
    %521 = vst.msk [vmem:[%s520] sm:$0xff] %vm519, %v518
    %s522 = scalar_lea.vmem [#allocation0], 65
    %v523 = vld [vmem:[%s522] ss:$8 sm:$0xf]
    %s524 = scalar_lea.vmem [#allocation0], 65
    %v525 = vld [vmem:[%s524] ss:$8 sm:$0xf0]
    %vm526 = vcmask 1047556
    %v527 = vsel %vm526, %v525, %v523
    %528 = vrot.lane.b32.xlu0 %v527, 16
    %v529 = vpop.permute.xlu0 %528
    %vm530 = vcmask 261248
    %s531 = scalar_lea.vmem %s1, 8
    %532 = vst.msk [vmem:[%s531] sm:$0xff] %vm530, %v529
    %s533 = scalar_lea.vmem [#allocation0], 321
    %v534 = vld [vmem:[%s533] ss:$8 sm:$0xf]
    %s535 = scalar_lea.vmem [#allocation0], 321
    %v536 = vld [vmem:[%s535] ss:$8 sm:$0xf0]
    %vm537 = vcmask 1047556
    %v538 = vsel %vm537, %v536, %v534
    %539 = vrot.lane.b32.xlu0 %v538, 16
    %v540 = vpop.permute.xlu0 %539
    %vm541 = vcmask 261248
    %s542 = scalar_lea.vmem %s1, 40
    %543 = vst.msk [vmem:[%s542] sm:$0xff] %vm541, %v540
    %s544 = scalar_lea.vmem [#allocation0], 129
    %v545 = vld [vmem:[%s544] ss:$8 sm:$0xf]
    %s546 = scalar_lea.vmem [#allocation0], 129
    %v547 = vld [vmem:[%s546] ss:$8 sm:$0xf0]
    %vm548 = vcmask 1047556
    %v549 = vsel %vm548, %v547, %v545
    %550 = vrot.lane.b32.xlu0 %v549, 16
    %v551 = vpop.permute.xlu0 %550
    %vm552 = vcmask 261248
    %s553 = scalar_lea.vmem %s1, 16
    %554 = vst.msk [vmem:[%s553] sm:$0xff] %vm552, %v551
    %s555 = scalar_lea.vmem [#allocation0], 385
    %v556 = vld [vmem:[%s555] ss:$8 sm:$0xf]
    %s557 = scalar_lea.vmem [#allocation0], 385
    %v558 = vld [vmem:[%s557] ss:$8 sm:$0xf0]
    %vm559 = vcmask 1047556
    %v560 = vsel %vm559, %v558, %v556
    %561 = vrot.lane.b32.xlu0 %v560, 16
    %v562 = vpop.permute.xlu0 %561
    %vm563 = vcmask 261248
    %s564 = scalar_lea.vmem %s1, 48
    %565 = vst.msk [vmem:[%s564] sm:$0xff] %vm563, %v562
    %s566 = scalar_lea.vmem [#allocation0], 193
    %v567 = vld [vmem:[%s566] ss:$8 sm:$0xf]
    %s568 = scalar_lea.vmem [#allocation0], 193
    %v569 = vld [vmem:[%s568] ss:$8 sm:$0xf0]
    %vm570 = vcmask 1047556
    %v571 = vsel %vm570, %v569, %v567
    %572 = vrot.lane.b32.xlu0 %v571, 16
    %v573 = vpop.permute.xlu0 %572
    %vm574 = vcmask 261248
    %s575 = scalar_lea.vmem %s1, 24
    %576 = vst.msk [vmem:[%s575] sm:$0xff] %vm574, %v573
    %s577 = scalar_lea.vmem [#allocation0], 449
    %v578 = vld [vmem:[%s577] ss:$8 sm:$0xf]
    %s579 = scalar_lea.vmem [#allocation0], 449
    %v580 = vld [vmem:[%s579] ss:$8 sm:$0xf0]
    %vm581 = vcmask 1047556
    %v582 = vsel %vm581, %v580, %v578
    %583 = vrot.lane.b32.xlu0 %v582, 16
    %v584 = vpop.permute.xlu0 %583
    %vm585 = vcmask 261248
    %s586 = scalar_lea.vmem %s1, 56
    %587 = vst.msk [vmem:[%s586] sm:$0xff] %vm585, %v584

// kernel: gpt_forward.1
$region0: #{gpt_forward.1}
  #allocation0 [shape = 'u32[]', space=smem, size = 0x4, offset = 0x4, fixed_abs, tag = 'smem constant byte address 0x4 - core index']
  #allocation1 [shape = 'u32[72,128]{1,0:T(1,128)}', space=vmem, size = 0x9000, scoped, tag = 'internal scratch']
  %s0 = inlined_call_operand.vmem [shape: f32[16,32], index: 0, kind: input, shape index: {}]
  %s1 = inlined_call_operand.vmem [shape: f32[64,64], index: 1, kind: input, shape index: {}]
  %s2 = inlined_call_operand.vmem [shape: f32[3,4,32], index: 2, kind: input, shape index: {}]
  %s3 = inlined_call_operand.vmem [shape: bf16[2,33,96], index: 3, kind: input, shape index: {}]
  %s4 = inlined_call_operand.vmem [shape: bf16[2,33,32], index: 4, kind: input, shape index: {}]
  %s5 = inlined_call_operand.vmem [shape: bf16[2,33,128], index: 5, kind: input, shape index: {}]
  %s6 = inlined_call_operand.vmem [shape: bf16[2,129,32], index: 6, kind: input, shape index: {}]
  %s7 = inlined_call_operand.vmem [shape: bf16[32,128], index: 7, kind: input, shape index: {}]
  %s8 = inlined_call_operand.hbm [shape: f32[16,128], index: 8, kind: output, shape index: {}]
  %s9 = sld [smem:[#allocation0]]
  $region42: #{gpt_forward.1} parent=0
    _
  %s11 = ssub.s32 1, %s9
  %s12 = scalar_select 0, %s11, %s9
  $region1: #{gpt_forward.1} parent=0
    #allocation2 [shape = 'u8[8192]{0}', space=vmem, size = 0x2000, scoped, tag = 'output window, operand 0, single buffered']
    #allocation3 [shape = 's32[1]{0}', space=sflag, size = 0x4, scoped, tag = 'scoped memory for gpt_forward.1']
    %13 = vsyncpa [#allocation3], 0
    // Predicated region
    $region2: #{gpt_forward.1} parent=1 // pred_check
      _
    $region3: #{gpt_forward.1} parent=1 // pred_check_branch
      %15 = sbr.rel (0) target = $region5
    $region4: #{gpt_forward.1} parent=1 // pred_region
      _
    $region5: #{gpt_forward.1} parent=1 // pred_fallthru
      _
    // Predicated region
    $region6: #{gpt_forward.1} parent=1 // pred_check
      _
    $region7: #{gpt_forward.1} parent=1 // pred_check_branch
      %17 = sbr.rel (0) target = $region9
    $region8: #{gpt_forward.1} parent=1 // pred_region
      _
    $region9: #{gpt_forward.1} parent=1 // pred_fallthru
      _
    // Predicated region
    $region10: #{gpt_forward.1} parent=1 // pred_check
      _
    $region11: #{gpt_forward.1} parent=1 // pred_check_branch
      %19 = sbr.rel (0) target = $region13
    $region12: #{gpt_forward.1} parent=1 // pred_region
      _
    $region13: #{gpt_forward.1} parent=1 // pred_fallthru
      _
    // Predicated region
    $region14: #{gpt_forward.1} parent=1 // pred_check
      _
    $region15: #{gpt_forward.1} parent=1 // pred_check_branch
      %21 = sbr.rel (0) target = $region17
    $region16: #{gpt_forward.1} parent=1 // pred_region
      _
    $region17: #{gpt_forward.1} parent=1 // pred_fallthru
      _
    // Predicated region
    $region18: #{gpt_forward.1} parent=1 // pred_check
      _
    $region19: #{gpt_forward.1} parent=1 // pred_check_branch
      %23 = sbr.rel (0) target = $region21
    $region20: #{gpt_forward.1} parent=1 // pred_region
      _
    $region21: #{gpt_forward.1} parent=1 // pred_fallthru
      _
    // Predicated region
    $region22: #{gpt_forward.1} parent=1 // pred_check
      _
    $region23: #{gpt_forward.1} parent=1 // pred_check_branch
      %25 = sbr.rel (0) target = $region25
    $region24: #{gpt_forward.1} parent=1 // pred_region
      _
    $region25: #{gpt_forward.1} parent=1 // pred_fallthru
      _
    // Predicated region
    $region26: #{gpt_forward.1} parent=1 // pred_check
      _
    $region27: #{gpt_forward.1} parent=1 // pred_check_branch
      %27 = sbr.rel (0) target = $region29
    $region28: #{gpt_forward.1} parent=1 // pred_region
      _
    $region29: #{gpt_forward.1} parent=1 // pred_fallthru
      _
    // Predicated region
    $region30: #{gpt_forward.1} parent=1 // pred_check
      _
    $region31: #{gpt_forward.1} parent=1 // pred_check_branch
      %29 = sbr.rel (0) target = $region33
    $region32: #{gpt_forward.1} parent=1 // pred_region
      _
    $region33: #{gpt_forward.1} parent=1 // pred_fallthru
      _
    %v31 = vld [vmem:[%s0] sm:$0xff]
    %v32 = vld [vmem:[%s0 + $0x8] sm:$0xff]
    %v33 = vld [vmem:[%s1] sm:$0xff]
    %v34 = vld [vmem:[%s1 + $0x8] sm:$0xff]
    %v35 = vld [vmem:[%s1 + $0x10] sm:$0xff]
    %v36 = vld [vmem:[%s1 + $0x18] sm:$0xff]
    %v37 = vld [vmem:[%s1 + $0x20] sm:$0xff]
    %v38 = vld [vmem:[%s1 + $0x28] sm:$0xff]
    %v39 = vld [vmem:[%s1 + $0x30] sm:$0xff]
    %v40 = vld [vmem:[%s1 + $0x38] sm:$0xff]
    %v41 = vld [vmem:[%s2] sm:$0xf]
    %v42 = vld [vmem:[%s3] sm:$0xf]
    %v43 = vld [vmem:[%s3 + $0x4] sm:$0xf]
    %v44 = vld [vmem:[%s3 + $0x8] sm:$0xf]
    %v45 = vld [vmem:[%s3 + $0xc] sm:$0xf]
    %v46 = vld [vmem:[%s3 + $0x10] sm:$0x1]
    %v47 = vld [vmem:[%s4] sm:$0xf]
    %v48 = vld [vmem:[%s4 + $0x4] sm:$0xf]
    %v49 = vld [vmem:[%s4 + $0x8] sm:$0xf]
    %v50 = vld [vmem:[%s4 + $0xc] sm:$0xf]
    %v51 = vld [vmem:[%s4 + $0x10] sm:$0x1]
    %v52 = vld [vmem:[%s5] sm:$0xf]
    %v53 = vld [vmem:[%s5 + $0x4] sm:$0xf]
    %v54 = vld [vmem:[%s5 + $0x8] sm:$0xf]
    %v55 = vld [vmem:[%s5 + $0xc] sm:$0xf]
    %v56 = vld [vmem:[%s5 + $0x10] sm:$0x1]
    %v57 = vld [vmem:[%s6] sm:$0xf]
    %v58 = vld [vmem:[%s6 + $0x4] sm:$0xf]
    %v59 = vld [vmem:[%s6 + $0x8] sm:$0xf]
    %v60 = vld [vmem:[%s6 + $0xc] sm:$0xf]
    %v61 = vld [vmem:[%s6 + $0x10] sm:$0xf]
    %v62 = vld [vmem:[%s6 + $0x14] sm:$0xf]
    %v63 = vld [vmem:[%s6 + $0x18] sm:$0xf]
    %v64 = vld [vmem:[%s6 + $0x1c] sm:$0xf]
    %v65 = vld [vmem:[%s6 + $0x20] sm:$0xf]
    %v66 = vld [vmem:[%s6 + $0x24] sm:$0xf]
    %v67 = vld [vmem:[%s6 + $0x28] sm:$0xf]
    %v68 = vld [vmem:[%s6 + $0x2c] sm:$0xf]
    %v69 = vld [vmem:[%s6 + $0x30] sm:$0xf]
    %v70 = vld [vmem:[%s6 + $0x34] sm:$0xf]
    %v71 = vld [vmem:[%s6 + $0x38] sm:$0xf]
    %v72 = vld [vmem:[%s6 + $0x3c] sm:$0xf]
    %v73 = vld [vmem:[%s6 + $0x40] sm:$0x1]
    %vm74 = vcmask 261120
    %v75 = vsel %vm74, %v31, 0.0
    %76 = vadd.xlane.f32.xlu0 %v75
    %v77 = vpop.xlane.xlu0 %76
    %v78 = vsel %vm74, %v32, 0.0
    %79 = vadd.xlane.f32.xlu0 %v78
    %v80 = vpop.xlane.xlu0 %79
    %v81 = vrcp.pop 32.0
    %v82 = vmul.f32 32.0, %v81
    %v83 = vsub.f32 1.0, %v82
    %v84 = vmul.f32 %v81, %v83
    %v85 = vadd.f32 %v81, %v84
    %vm86 = vweird.f32 %v81
    %v87 = vsel %vm86, %v81, %v85
    %v88 = vmul.f32 %v77, %v87
    %v89 = vmul.f32 %v80, %v87
    %v90 = vmul.f32 %v31, %v31
    %v91 = vmul.f32 %v32, %v32
    %v92 = vsel %vm74, %v90, 0.0
    %93 = vadd.xlane.f32.xlu0 %v92
    %v94 = vpop.xlane.xlu0 %93
    %v95 = vsel %vm74, %v91, 0.0
    %96 = vadd.xlane.f32.xlu0 %v95
    %v97 = vpop.xlane.xlu0 %96
    %v98 = vmul.f32 %v94, %v87
    %v99 = vmul.f32 %v97, %v87
    %v100 = vmul.f32 %v88, %v88
    %v101 = vmul.f32 %v89, %v89
    %v102 = vsub.f32 %v98, %v100
    %v103 = vsub.f32 %v99, %v101
    %v104 = vsub.f32 %v31, %v88
    %v105 = vsub.f32 %v32, %v89
    %v106 = vadd.f32 %v102, 1e-05
    %v107 = vadd.f32 %v103, 1e-05
    %v108 = vrsqrt.pop %v106
    %v109 = vmul.f32 %v108, %v106
    %v110 = vmul.f32 %v109, %v108
    %v111 = vmul.f32 0.5, %v110
    %v112 = vsub.f32 1.5, %v111
    %v113 = vmul.f32 %v108, %v112
    %vm114 = vweird.f32 %v106
    %vm115 = vweird.f32 %v108
    %vm116 = vmor %vm114, %vm115
    %v117 = vsel %vm116, %v108, %v113
    %v118 = vrsqrt.pop %v107
    %v119 = vmul.f32 %v118, %v107
    %v120 = vmul.f32 %v119, %v118
    %v121 = vmul.f32 0.5, %v120
    %v122 = vsub.f32 1.5, %v121
    %v123 = vmul.f32 %v118, %v122
    %vm124 = vweird.f32 %v107
    %vm125 = vweird.f32 %v118
    %vm126 = vmor %vm124, %vm125
    %v127 = vsel %vm126, %v118, %v123
    %v128 = vmul.f32 %v104, %v117
    %v129 = vmul.f32 %v105, %v127
    %v130 = vperm.slane %v41, 0
    %v131 = vmul.f32 %v128, %v130
    %v132 = vmul.f32 %v129, %v130
    %v133 = vperm.slane %v41, 1
    %v134 = vadd.f32 %v131, %v133
    %v135 = vadd.f32 %v132, %v133
    %v136 = vpack.c.bf16 %v135, %v134
    %v137 = vunpack.c.l.bf16 %v46
    %v138 = vperm.slane %v137, 0
    %v143 = vunpack.c.l.b16 %v42
    %v144 = vunpack.c.l.b16 %v43
    %v145 = vunpack.c.l.b16 %v44
    %v146 = vunpack.c.l.b16 %v45
    %v147 = vpack.c.b16 %v144, %v143
    %v148 = vpack.c.b16 %v146, %v145
    %v152 = vsel %vm74, %v136, 0
    %154 = vmatpush.bf16.msra.mxu0 0
    %155 = vmatpush.bf16.msra.mxu0 0
    %156 = vmatpush.bf16.msra.mxu0 0
    %157 = vmatpush.bf16.msra.mxu0 0
    %158 = vmatpush.bf16.msra.mxu0 0
    %159 = vmatpush.bf16.msra.mxu0 0
    %160 = vmatpush.bf16.msra.mxu0 %v148
    %161 = vmatpush.bf16.msra.mxu0 %v147
    %162 = vmatmul.bf16.gmra.mxu0 %v152
    %v163 = vpop.f32.mrf.mxu0
    %v164 = vadd.f32 %v138, %v163
    %v165 = vpop.f32.mrf.mxu0
    %v166 = vadd.f32 %v138, %v165
    %167 = vdwg.mxu0
    %170 = vrot.lane.b32.xlu0 %v164, 120
    %v171 = vpop.permute.xlu0 %170
    %172 = vrot.lane.b32.xlu0 %v166, 120
    %v173 = vpop.permute.xlu0 %172
    %176 = vrot.lane.b32.xlu0 %v164, 112
    %v177 = vpop.permute.xlu0 %176
    %178 = vrot.lane.b32.xlu0 %v166, 112
    %v179 = vpop.permute.xlu0 %178
    %182 = vrot.lane.b32.xlu0 %v164, 104
    %v183 = vpop.permute.xlu0 %182
    %184 = vrot.lane.b32.xlu0 %v166, 104
    %v185 = vpop.permute.xlu0 %184
    %v188 = vpack.c.bf16 %v166, %v164
    %v189 = vpack.c.bf16 %v173, %v171
    %v190 = vpack.c.bf16 %v179, %v177
    %v191 = vpack.c.bf16 %v185, %v183
    %196 = vrot.lane.b32.xlu0 %v188, 96
    %v197 = vpop.permute.xlu0 %196
    %198 = vrot.lane.b32.xlu0 %v189, 96
    %v199 = vpop.permute.xlu0 %198
    %200 = vrot.lane.b32.xlu0 %v190, 96
    %v201 = vpop.permute.xlu0 %200
    %202 = vrot.lane.b32.xlu0 %v191, 96
    %v203 = vpop.permute.xlu0 %202
    %vm204 = vcmask 64512
    %v206 = vsel %vm204, %v188, 0
    %v209 = vsel %vm204, %v189, 0
    %v212 = vsel %vm204, %v190, 0
    %v215 = vsel %vm204, %v191, 0
    %v218 = vsel %vm204, %v197, 0
    %v221 = vsel %vm204, %v199, 0
    %v224 = vsel %vm204, %v201, 0
    %v227 = vsel %vm204, %v203, 0
    %229 = vmatpush.bf16.xpose.msra.mxu0 0
    %230 = vmatpush.bf16.xpose.msra.mxu0 0
    %231 = vmatpush.bf16.xpose.msra.mxu0 0
    %232 = vmatpush.bf16.xpose.msra.mxu0 0
    %233 = vmatpush.bf16.xpose.msra.mxu0 %v227
    %234 = vmatpush.bf16.xpose.msra.mxu0 %v224
    %235 = vmatpush.bf16.xpose.msra.mxu0 %v221
    %236 = vmatpush.bf16.xpose.msra.mxu0 %v218
    %237 = vmatmul.bf16.gmra.mxu0 %v206
    %v238 = vpop.f32.mrf.mxu0
    %v239 = vadd.f32 %v33, %v238
    %v240 = vpop.f32.mrf.mxu0
    %v241 = vadd.f32 %v34, %v240
    %242 = vmatmul.bf16.gmra.mxu0 %v209
    %v243 = vpop.f32.mrf.mxu0
    %v244 = vadd.f32 %v35, %v243
    %v245 = vpop.f32.mrf.mxu0
    %v246 = vadd.f32 %v36, %v245
    %247 = vmatmul.bf16.gmra.mxu0 %v212
    %v248 = vpop.f32.mrf.mxu0
    %v249 = vadd.f32 %v37, %v248
    %v250 = vpop.f32.mrf.mxu0
    %v251 = vadd.f32 %v38, %v250
    %252 = vmatmul.bf16.gmra.mxu0 %v215
    %v253 = vpop.f32.mrf.mxu0
    %v254 = vadd.f32 %v39, %v253
    %v255 = vpop.f32.mrf.mxu0
    %v256 = vadd.f32 %v40, %v255
    %257 = vdwg.mxu0
    %v258 = vmul.f32 %v239, 1.442695
    %v259 = vpow.pop %v258
    %v260 = vmul.f32 %v241, 1.442695
    %v261 = vpow.pop %v260
    %v262 = vmul.f32 %v244, 1.442695
    %v263 = vpow.pop %v262
    %v264 = vmul.f32 %v246, 1.442695
    %v265 = vpow.pop %v264
    %v266 = vmul.f32 %v249, 1.442695
    %v267 = vpow.pop %v266
    %v268 = vmul.f32 %v251, 1.442695
    %v269 = vpow.pop %v268
    %v270 = vmul.f32 %v254, 1.442695
    %v271 = vpow.pop %v270
    %v272 = vmul.f32 %v256, 1.442695
    %v273 = vpow.pop %v272
    %vm274 = vcmask 523264
    %v275 = vsel %vm274, %v259, 0.0
    %276 = vadd.xlane.f32.xlu0 %v275
    %v277 = vpop.xlane.xlu0 %276
    %v278 = vsel %vm274, %v261, 0.0
    %279 = vadd.xlane.f32.xlu0 %v278
    %v280 = vpop.xlane.xlu0 %279
    %v281 = vsel %vm274, %v263, 0.0
    %282 = vadd.xlane.f32.xlu0 %v281
    %v283 = vpop.xlane.xlu0 %282
    %v284 = vsel %vm274, %v265, 0.0
    %285 = vadd.xlane.f32.xlu0 %v284
    %v286 = vpop.xlane.xlu0 %285
    %v287 = vsel %vm274, %v267, 0.0
    %288 = vadd.xlane.f32.xlu0 %v287
    %v289 = vpop.xlane.xlu0 %288
    %v290 = vsel %vm274, %v269, 0.0
    %291 = vadd.xlane.f32.xlu0 %v290
    %v292 = vpop.xlane.xlu0 %291
    %v293 = vsel %vm274, %v271, 0.0
    %294 = vadd.xlane.f32.xlu0 %v293
    %v295 = vpop.xlane.xlu0 %294
    %v296 = vsel %vm274, %v273, 0.0
    %297 = vadd.xlane.f32.xlu0 %v296
    %v298 = vpop.xlane.xlu0 %297
    %v299 = vadd.f32 %v277, 1e-30
    %v300 = vadd.f32 %v280, 1e-30
    %v301 = vadd.f32 %v283, 1e-30
    %v302 = vadd.f32 %v286, 1e-30
    %v303 = vadd.f32 %v289, 1e-30
    %v304 = vadd.f32 %v292, 1e-30
    %v305 = vadd.f32 %v295, 1e-30
    %v306 = vadd.f32 %v298, 1e-30
    %v307 = vrcp.pop %v299
    %v308 = vrcp.pop %v300
    %v309 = vrcp.pop %v301
    %v310 = vrcp.pop %v302
    %v311 = vrcp.pop %v303
    %v312 = vrcp.pop %v304
    %v313 = vrcp.pop %v305
    %v314 = vrcp.pop %v306
    %v315 = vmul.f32 %v259, %v307
    %v316 = vmul.f32 %v261, %v308
    %v317 = vmul.f32 %v263, %v309
    %v318 = vmul.f32 %v265, %v310
    %v319 = vmul.f32 %v267, %v311
    %v320 = vmul.f32 %v269, %v312
    %v321 = vmul.f32 %v271, %v313
    %v322 = vmul.f32 %v273, %v314
    %v323 = vpack.c.bf16 %v316, %v315
    %v324 = vpack.c.bf16 %v318, %v317
    %v325 = vpack.c.bf16 %v320, %v319
    %v326 = vpack.c.bf16 %v322, %v321
    %327 = vrot.lane.b32.xlu0 %v188, 64
    %v328 = vpop.permute.xlu0 %327
    %329 = vrot.lane.b32.xlu0 %v189, 64
    %v330 = vpop.permute.xlu0 %329
    %331 = vrot.lane.b32.xlu0 %v190, 64
    %v332 = vpop.permute.xlu0 %331
    %333 = vrot.lane.b32.xlu0 %v191, 64
    %v334 = vpop.permute.xlu0 %333
    %v340 = vsel %vm274, %v323, 0
    %v343 = vsel %vm274, %v324, 0
    %v346 = vsel %vm274, %v325, 0
    %v349 = vsel %vm274, %v326, 0
    %351 = vmatpush.bf16.msra.mxu0 0
    %352 = vmatpush.bf16.msra.mxu0 0
    %353 = vmatpush.bf16.msra.mxu0 0
    %354 = vmatpush.bf16.msra.mxu0 0
    %355 = vmatpush.bf16.msra.mxu0 %v334
    %356 = vmatpush.bf16.msra.mxu0 %v332
    %357 = vmatpush.bf16.msra.mxu0 %v330
    %358 = vmatpush.bf16.msra.mxu0 %v328
    %359 = vmatmul.bf16.gmra.mxu0 %v340
    %v360 = vpop.f32.mrf.mxu0
    %v361 = vadd.f32 0.0, %v360
    %v362 = vpop.f32.mrf.mxu0
    %v363 = vadd.f32 0.0, %v362
    %364 = vmatmul.bf16.gmra.mxu0 %v343
    %v365 = vpop.f32.mrf.mxu0
    %v366 = vadd.f32 0.0, %v365
    %v367 = vpop.f32.mrf.mxu0
    %v368 = vadd.f32 0.0, %v367
    %369 = vmatmul.bf16.gmra.mxu0 %v346
    %v370 = vpop.f32.mrf.mxu0
    %v371 = vadd.f32 0.0, %v370
    %v372 = vpop.f32.mrf.mxu0
    %v373 = vadd.f32 0.0, %v372
    %374 = vmatmul.bf16.gmra.mxu0 %v349
    %v375 = vpop.f32.mrf.mxu0
    %v376 = vadd.f32 0.0, %v375
    %v377 = vpop.f32.mrf.mxu0
    %v378 = vadd.f32 0.0, %v377
    %379 = vdwg.mxu0
    %382 = vrot.lane.b32.xlu0 %v366, 8
    %v383 = vpop.permute.xlu0 %382
    %384 = vrot.lane.b32.xlu0 %v368, 8
    %v385 = vpop.permute.xlu0 %384
    %390 = vrot.lane.b32.xlu0 %v371, 16
    %v391 = vpop.permute.xlu0 %390
    %392 = vrot.lane.b32.xlu0 %v373, 16
    %v393 = vpop.permute.xlu0 %392
    %398 = vrot.lane.b32.xlu0 %v376, 24
    %v399 = vpop.permute.xlu0 %398
    %400 = vrot.lane.b32.xlu0 %v378, 24
    %v401 = vpop.permute.xlu0 %400
    %v404 = vsel %vm204, %v361, %v383
    %v405 = vsel %vm204, %v363, %v385
    %vm406 = vcmask 130048
    %v407 = vsel %vm406, %v404, %v391
    %v408 = vsel %vm406, %v405, %v393
    %vm409 = vcmask 195584
    %v410 = vsel %vm409, %v407, %v399
    %v411 = vsel %vm409, %v408, %v401
    %v412 = vpack.c.bf16 %v411, %v410
    %v413 = vunpack.c.l.bf16 %v51
    %v414 = vperm.slane %v413, 0
    %v419 = vunpack.c.l.b16 %v47
    %v420 = vunpack.c.l.b16 %v48
    %v421 = vunpack.c.l.b16 %v49
    %v422 = vunpack.c.l.b16 %v50
    %v423 = vpack.c.b16 %v420, %v419
    %v424 = vpack.c.b16 %v422, %v421
    %v428 = vsel %vm74, %v412, 0
    %430 = vmatpush.bf16.msra.mxu0 0
    %431 = vmatpush.bf16.msra.mxu0 0
    %432 = vmatpush.bf16.msra.mxu0 0
    %433 = vmatpush.bf16.msra.mxu0 0
    %434 = vmatpush.bf16.msra.mxu0 0
    %435 = vmatpush.bf16.msra.mxu0 0
    %436 = vmatpush.bf16.msra.mxu0 %v424
    %437 = vmatpush.bf16.msra.mxu0 %v423
    %438 = vmatmul.bf16.gmra.mxu0 %v428
    %v439 = vpop.f32.mrf.mxu0
    %v440 = vadd.f32 %v414, %v439
    %v441 = vpop.f32.mrf.mxu0
    %v442 = vadd.f32 %v414, %v441
    %443 = vdwg.mxu0
    %v444 = vadd.f32 %v31, %v440
    %v445 = vadd.f32 %v32, %v442
    %v446 = vsel %vm74, %v444, 0.0
    %447 = vadd.xlane.f32.xlu0 %v446
    %v448 = vpop.xlane.xlu0 %447
    %v449 = vsel %vm74, %v445, 0.0
    %450 = vadd.xlane.f32.xlu0 %v449
    %v451 = vpop.xlane.xlu0 %450
    %v452 = vmul.f32 %v448, %v87
    %v453 = vmul.f32 %v451, %v87
    %v454 = vmul.f32 %v444, %v444
    %v455 = vmul.f32 %v445, %v445
    %v456 = vsel %vm74, %v454, 0.0
    %457 = vadd.xlane.f32.xlu0 %v456
    %v458 = vpop.xlane.xlu0 %457
    %v459 = vsel %vm74, %v455, 0.0
    %460 = vadd.xlane.f32.xlu0 %v459
    %v461 = vpop.xlane.xlu0 %460
    %v462 = vmul.f32 %v458, %v87
    %v463 = vmul.f32 %v461, %v87
    %v464 = vmul.f32 %v452, %v452
    %v465 = vmul.f32 %v453, %v453
    %v466 = vsub.f32 %v462, %v464
    %v467 = vsub.f32 %v463, %v465
    %v468 = vsub.f32 %v444, %v452
    %v469 = vsub.f32 %v445, %v453
    %v470 = vadd.f32 %v466, 1e-05
    %v471 = vadd.f32 %v467, 1e-05
    %v472 = vrsqrt.pop %v470
    %v473 = vmul.f32 %v472, %v470
    %v474 = vmul.f32 %v473, %v472
    %v475 = vmul.f32 0.5, %v474
    %v476 = vsub.f32 1.5, %v475
    %v477 = vmul.f32 %v472, %v476
    %vm478 = vweird.f32 %v470
    %vm479 = vweird.f32 %v472
    %vm480 = vmor %vm478, %vm479
    %v481 = vsel %vm480, %v472, %v477
    %v482 = vrsqrt.pop %v471
    %v483 = vmul.f32 %v482, %v471
    %v484 = vmul.f32 %v483, %v482
    %v485 = vmul.f32 0.5, %v484
    %v486 = vsub.f32 1.5, %v485
    %v487 = vmul.f32 %v482, %v486
    %vm488 = vweird.f32 %v471
    %vm489 = vweird.f32 %v482
    %vm490 = vmor %vm488, %vm489
    %v491 = vsel %vm490, %v482, %v487
    %v492 = vmul.f32 %v468, %v481
    %v493 = vmul.f32 %v469, %v491
    %v494 = vperm.slane %v41, 2
    %v495 = vmul.f32 %v492, %v494
    %v496 = vmul.f32 %v493, %v494
    %v497 = vperm.slane %v41, 3
    %v498 = vadd.f32 %v495, %v497
    %v499 = vadd.f32 %v496, %v497
    %v500 = vpack.c.bf16 %v499, %v498
    %v501 = vunpack.c.l.bf16 %v56
    %v502 = vperm.slane %v501, 0
    %v507 = vunpack.c.l.b16 %v52
    %v508 = vunpack.c.l.b16 %v53
    %v509 = vunpack.c.l.b16 %v54
    %v510 = vunpack.c.l.b16 %v55
    %v511 = vpack.c.b16 %v508, %v507
    %v512 = vpack.c.b16 %v510, %v509
    %v516 = vsel %vm74, %v500, 0
    %518 = vmatpush.bf16.msra.mxu0 0
    %519 = vmatpush.bf16.msra.mxu0 0
    %520 = vmatpush.bf16.msra.mxu0 0
    %521 = vmatpush.bf16.msra.mxu0 0
    %522 = vmatpush.bf16.msra.mxu0 0
    %523 = vmatpush.bf16.msra.mxu0 0
    %524 = vmatpush.bf16.msra.mxu0 %v512
    %525 = vmatpush.bf16.msra.mxu0 %v511
    %526 = vmatmul.bf16.gmra.mxu0 %v516
    %v527 = vpop.f32.mrf.mxu0
    %v528 = vadd.f32 %v502, %v527
    %v529 = vpop.f32.mrf.mxu0
    %v530 = vadd.f32 %v502, %v529
    %531 = vdwg.mxu0
    %v532 = vmul.f32 %v528, %v528
    %v533 = vmul.f32 %v530, %v530
    %v534 = vmul.f32 %v528, %v532
    %v535 = vmul.f32 %v530, %v533
    %v536 = vmul.f32 %v534, 0.044715
    %v537 = vmul.f32 %v535, 0.044715
    %v538 = vadd.f32 %v528, %v536
    %v539 = vadd.f32 %v530, %v537
    %v540 = vmul.f32 %v538, 0.7978846
    %v541 = vmul.f32 %v539, 0.7978846
    %v542 = vtanh.pop %v540
    %v543 = vtanh.pop %v541
    %v544 = vadd.f32 %v542, 1.0
    %v545 = vadd.f32 %v543, 1.0
    %v546 = vmul.f32 %v544, 0.5
    %v547 = vmul.f32 %v545, 0.5
    %v548 = vmul.f32 %v528, %v546
    %v549 = vmul.f32 %v530, %v547
    %v550 = vpack.c.bf16 %v549, %v548
    %v551 = vunpack.c.l.bf16 %v73
    %v552 = vperm.slane %v551, 0
    %v569 = vunpack.c.l.b16 %v57
    %v570 = vunpack.c.l.b16 %v58
    %v571 = vunpack.c.l.b16 %v59
    %v572 = vunpack.c.l.b16 %v60
    %v573 = vunpack.c.l.b16 %v61
    %v574 = vunpack.c.l.b16 %v62
    %v575 = vunpack.c.l.b16 %v63
    %v576 = vunpack.c.l.b16 %v64
    %v577 = vunpack.c.l.b16 %v65
    %v578 = vunpack.c.l.b16 %v66
    %v579 = vunpack.c.l.b16 %v67
    %v580 = vunpack.c.l.b16 %v68
    %v581 = vunpack.c.l.b16 %v69
    %v582 = vunpack.c.l.b16 %v70
    %v583 = vunpack.c.l.b16 %v71
    %v584 = vunpack.c.l.b16 %v72
    %v585 = vpack.c.b16 %v570, %v569
    %v586 = vpack.c.b16 %v572, %v571
    %v587 = vpack.c.b16 %v574, %v573
    %v588 = vpack.c.b16 %v576, %v575
    %v589 = vpack.c.b16 %v578, %v577
    %v590 = vpack.c.b16 %v580, %v579
    %v591 = vpack.c.b16 %v582, %v581
    %v592 = vpack.c.b16 %v584, %v583
    %601 = vmatpush.bf16.msra.mxu0 %v592
    %602 = vmatpush.bf16.msra.mxu0 %v591
    %603 = vmatpush.bf16.msra.mxu0 %v590
    %604 = vmatpush.bf16.msra.mxu0 %v589
    %605 = vmatpush.bf16.msra.mxu0 %v588
    %606 = vmatpush.bf16.msra.mxu0 %v587
    %607 = vmatpush.bf16.msra.mxu0 %v586
    %608 = vmatpush.bf16.msra.mxu0 %v585
    %609 = vmatmul.bf16.gmra.mxu0 %v550
    %v610 = vpop.f32.mrf.mxu0
    %v611 = vadd.f32 %v552, %v610
    %v612 = vpop.f32.mrf.mxu0
    %v613 = vadd.f32 %v552, %v612
    %614 = vdwg.mxu0
    %v615 = vadd.f32 %v444, %v611
    %v616 = vadd.f32 %v445, %v613
    %s617 = scalar_lea.vmem %s2, 4
    %v618 = vld [vmem:[%s617] sm:$0xf]
    %s619 = scalar_lea.vmem %s3, 20
    %v620 = vld [vmem:[%s619] sm:$0xf]
    %v621 = vld [vmem:[%s619 + $0x4] sm:$0xf]
    %v622 = vld [vmem:[%s619 + $0x8] sm:$0xf]
    %v623 = vld [vmem:[%s619 + $0xc] sm:$0xf]
    %v624 = vld [vmem:[%s619 + $0x10] sm:$0x1]
    %s625 = scalar_lea.vmem %s4, 20
    %v626 = vld [vmem:[%s625] sm:$0xf]
    %v627 = vld [vmem:[%s625 + $0x4] sm:$0xf]
    %v628 = vld [vmem:[%s625 + $0x8] sm:$0xf]
    %v629 = vld [vmem:[%s625 + $0xc] sm:$0xf]
    %v630 = vld [vmem:[%s625 + $0x10] sm:$0x1]
    %s631 = scalar_lea.vmem %s5, 20
    %v632 = vld [vmem:[%s631] sm:$0xf]
    %v633 = vld [vmem:[%s631 + $0x4] sm:$0xf]
    %v634 = vld [vmem:[%s631 + $0x8] sm:$0xf]
    %v635 = vld [vmem:[%s631 + $0xc] sm:$0xf]
    %v636 = vld [vmem:[%s631 + $0x10] sm:$0x1]
    %s637 = scalar_lea.vmem %s6, 68
    %v638 = vld [vmem:[%s637] sm:$0xf]
    %v639 = vld [vmem:[%s637 + $0x4] sm:$0xf]
    %v640 = vld [vmem:[%s637 + $0x8] sm:$0xf]
    %v641 = vld [vmem:[%s637 + $0xc] sm:$0xf]
    %v642 = vld [vmem:[%s637 + $0x10] sm:$0xf]
    %v643 = vld [vmem:[%s637 + $0x14] sm:$0xf]
    %v644 = vld [vmem:[%s637 + $0x18] sm:$0xf]
    %v645 = vld [vmem:[%s637 + $0x1c] sm:$0xf]
    %v646 = vld [vmem:[%s637 + $0x20] sm:$0xf]
    %v647 = vld [vmem:[%s637 + $0x24] sm:$0xf]
    %v648 = vld [vmem:[%s637 + $0x28] sm:$0xf]
    %v649 = vld [vmem:[%s637 + $0x2c] sm:$0xf]
    %v650 = vld [vmem:[%s637 + $0x30] sm:$0xf]
    %v651 = vld [vmem:[%s637 + $0x34] sm:$0xf]
    %v652 = vld [vmem:[%s637 + $0x38] sm:$0xf]
    %v653 = vld [vmem:[%s637 + $0x3c] sm:$0xf]
    %v654 = vld [vmem:[%s637 + $0x40] sm:$0x1]
    %v655 = vsel %vm74, %v615, 0.0
    %656 = vadd.xlane.f32.xlu0 %v655
    %v657 = vpop.xlane.xlu0 %656
    %v658 = vsel %vm74, %v616, 0.0
    %659 = vadd.xlane.f32.xlu0 %v658
    %v660 = vpop.xlane.xlu0 %659
    %v661 = vmul.f32 %v657, %v87
    %v662 = vmul.f32 %v660, %v87
    %v663 = vmul.f32 %v615, %v615
    %v664 = vmul.f32 %v616, %v616
    %v665 = vsel %vm74, %v663, 0.0
    %666 = vadd.xlane.f32.xlu0 %v665
    %v667 = vpop.xlane.xlu0 %666
    %v668 = vsel %vm74, %v664, 0.0
    %669 = vadd.xlane.f32.xlu0 %v668
    %v670 = vpop.xlane.xlu0 %669
    %v671 = vmul.f32 %v667, %v87
    %v672 = vmul.f32 %v670, %v87
    %v673 = vmul.f32 %v661, %v661
    %v674 = vmul.f32 %v662, %v662
    %v675 = vsub.f32 %v671, %v673
    %v676 = vsub.f32 %v672, %v674
    %v677 = vsub.f32 %v615, %v661
    %v678 = vsub.f32 %v616, %v662
    %v679 = vadd.f32 %v675, 1e-05
    %v680 = vadd.f32 %v676, 1e-05
    %v681 = vrsqrt.pop %v679
    %v682 = vmul.f32 %v681, %v679
    %v683 = vmul.f32 %v682, %v681
    %v684 = vmul.f32 0.5, %v683
    %v685 = vsub.f32 1.5, %v684
    %v686 = vmul.f32 %v681, %v685
    %vm687 = vweird.f32 %v679
    %vm688 = vweird.f32 %v681
    %vm689 = vmor %vm687, %vm688
    %v690 = vsel %vm689, %v681, %v686
    %v691 = vrsqrt.pop %v680
    %v692 = vmul.f32 %v691, %v680
    %v693 = vmul.f32 %v692, %v691
    %v694 = vmul.f32 0.5, %v693
    %v695 = vsub.f32 1.5, %v694
    %v696 = vmul.f32 %v691, %v695
    %vm697 = vweird.f32 %v680
    %vm698 = vweird.f32 %v691
    %vm699 = vmor %vm697, %vm698
    %v700 = vsel %vm699, %v691, %v696
    %v701 = vmul.f32 %v677, %v690
    %v702 = vmul.f32 %v678, %v700
    %v703 = vperm.slane %v618, 0
    %v704 = vmul.f32 %v701, %v703
    %v705 = vmul.f32 %v702, %v703
    %v706 = vperm.slane %v618, 1
    %v707 = vadd.f32 %v704, %v706
    %v708 = vadd.f32 %v705, %v706
    %v709 = vpack.c.bf16 %v708, %v707
    %v710 = vunpack.c.l.bf16 %v624
    %v711 = vperm.slane %v710, 0
    %v716 = vunpack.c.l.b16 %v620
    %v717 = vunpack.c.l.b16 %v621
    %v718 = vunpack.c.l.b16 %v622
    %v719 = vunpack.c.l.b16 %v623
    %v720 = vpack.c.b16 %v717, %v716
    %v721 = vpack.c.b16 %v719, %v718
    %v725 = vsel %vm74, %v709, 0
    %727 = vmatpush.bf16.msra.mxu0 0
    %728 = vmatpush.bf16.msra.mxu0 0
    %729 = vmatpush.bf16.msra.mxu0 0
    %730 = vmatpush.bf16.msra.mxu0 0
    %731 = vmatpush.bf16.msra.mxu0 0
    %732 = vmatpush.bf16.msra.mxu0 0
    %733 = vmatpush.bf16.msra.mxu0 %v721
    %734 = vmatpush.bf16.msra.mxu0 %v720
    %735 = vmatmul.bf16.gmra.mxu0 %v725
    %v736 = vpop.f32.mrf.mxu0
    %v737 = vadd.f32 %v711, %v736
    %v738 = vpop.f32.mrf.mxu0
    %v739 = vadd.f32 %v711, %v738
    %740 = vdwg.mxu0
    %743 = vrot.lane.b32.xlu0 %v737, 120
    %v744 = vpop.permute.xlu0 %743
    %745 = vrot.lane.b32.xlu0 %v739, 120
    %v746 = vpop.permute.xlu0 %745
    %749 = vrot.lane.b32.xlu0 %v737, 112
    %v750 = vpop.permute.xlu0 %749
    %751 = vrot.lane.b32.xlu0 %v739, 112
    %v752 = vpop.permute.xlu0 %751
    %755 = vrot.lane.b32.xlu0 %v737, 104
    %v756 = vpop.permute.xlu0 %755
    %757 = vrot.lane.b32.xlu0 %v739, 104
    %v758 = vpop.permute.xlu0 %757
    %v761 = vpack.c.bf16 %v739, %v737
    %v762 = vpack.c.bf16 %v746, %v744
    %v763 = vpack.c.bf16 %v752, %v750
    %v764 = vpack.c.bf16 %v758, %v756
    %769 = vrot.lane.b32.xlu0 %v761, 96
    %v770 = vpop.permute.xlu0 %769
    %771 = vrot.lane.b32.xlu0 %v762, 96
    %v772 = vpop.permute.xlu0 %771
    %773 = vrot.lane.b32.xlu0 %v763, 96
    %v774 = vpop.permute.xlu0 %773
    %775 = vrot.lane.b32.xlu0 %v764, 96
    %v776 = vpop.permute.xlu0 %775
    %v778 = vsel %vm204, %v761, 0
    %v781 = vsel %vm204, %v762, 0
    %v784 = vsel %vm204, %v763, 0
    %v787 = vsel %vm204, %v764, 0
    %v790 = vsel %vm204, %v770, 0
    %v793 = vsel %vm204, %v772, 0
    %v796 = vsel %vm204, %v774, 0
    %v799 = vsel %vm204, %v776, 0
    %801 = vmatpush.bf16.xpose.msra.mxu0 0
    %802 = vmatpush.bf16.xpose.msra.mxu0 0
    %803 = vmatpush.bf16.xpose.msra.mxu0 0
    %804 = vmatpush.bf16.xpose.msra.mxu0 0
    %805 = vmatpush.bf16.xpose.msra.mxu0 %v799
    %806 = vmatpush.bf16.xpose.msra.mxu0 %v796
    %807 = vmatpush.bf16.xpose.msra.mxu0 %v793
    %808 = vmatpush.bf16.xpose.msra.mxu0 %v790
    %809 = vmatmul.bf16.gmra.mxu0 %v778
    %v810 = vpop.f32.mrf.mxu0
    %v811 = vadd.f32 %v33, %v810
    %v812 = vpop.f32.mrf.mxu0
    %v813 = vadd.f32 %v34, %v812
    %814 = vmatmul.bf16.gmra.mxu0 %v781
    %v815 = vpop.f32.mrf.mxu0
    %v816 = vadd.f32 %v35, %v815
    %v817 = vpop.f32.mrf.mxu0
    %v818 = vadd.f32 %v36, %v817
    %819 = vmatmul.bf16.gmra.mxu0 %v784
    %v820 = vpop.f32.mrf.mxu0
    %v821 = vadd.f32 %v37, %v820
    %v822 = vpop.f32.mrf.mxu0
    %v823 = vadd.f32 %v38, %v822
    %824 = vmatmul.bf16.gmra.mxu0 %v787
    %v825 = vpop.f32.mrf.mxu0
    %v826 = vadd.f32 %v39, %v825
    %v827 = vpop.f32.mrf.mxu0
    %v828 = vadd.f32 %v40, %v827
    %829 = vdwg.mxu0
    %v830 = vmul.f32 %v811, 1.442695
    %v831 = vpow.pop %v830
    %v832 = vmul.f32 %v813, 1.442695
    %v833 = vpow.pop %v832
    %v834 = vmul.f32 %v816, 1.442695
    %v835 = vpow.pop %v834
    %v836 = vmul.f32 %v818, 1.442695
    %v837 = vpow.pop %v836
    %v838 = vmul.f32 %v821, 1.442695
    %v839 = vpow.pop %v838
    %v840 = vmul.f32 %v823, 1.442695
    %v841 = vpow.pop %v840
    %v842 = vmul.f32 %v826, 1.442695
    %v843 = vpow.pop %v842
    %v844 = vmul.f32 %v828, 1.442695
    %v845 = vpow.pop %v844
    %v846 = vsel %vm274, %v831, 0.0
    %847 = vadd.xlane.f32.xlu0 %v846
    %v848 = vpop.xlane.xlu0 %847
    %v849 = vsel %vm274, %v833, 0.0
    %850 = vadd.xlane.f32.xlu0 %v849
    %v851 = vpop.xlane.xlu0 %850
    %v852 = vsel %vm274, %v835, 0.0
    %853 = vadd.xlane.f32.xlu0 %v852
    %v854 = vpop.xlane.xlu0 %853
    %v855 = vsel %vm274, %v837, 0.0
    %856 = vadd.xlane.f32.xlu0 %v855
    %v857 = vpop.xlane.xlu0 %856
    %v858 = vsel %vm274, %v839, 0.0
    %859 = vadd.xlane.f32.xlu0 %v858
    %v860 = vpop.xlane.xlu0 %859
    %v861 = vsel %vm274, %v841, 0.0
    %862 = vadd.xlane.f32.xlu0 %v861
    %v863 = vpop.xlane.xlu0 %862
    %v864 = vsel %vm274, %v843, 0.0
    %865 = vadd.xlane.f32.xlu0 %v864
    %v866 = vpop.xlane.xlu0 %865
    %v867 = vsel %vm274, %v845, 0.0
    %868 = vadd.xlane.f32.xlu0 %v867
    %v869 = vpop.xlane.xlu0 %868
    %v870 = vadd.f32 %v848, 1e-30
    %v871 = vadd.f32 %v851, 1e-30
    %v872 = vadd.f32 %v854, 1e-30
    %v873 = vadd.f32 %v857, 1e-30
    %v874 = vadd.f32 %v860, 1e-30
    %v875 = vadd.f32 %v863, 1e-30
    %v876 = vadd.f32 %v866, 1e-30
    %v877 = vadd.f32 %v869, 1e-30
    %v878 = vrcp.pop %v870
    %v879 = vrcp.pop %v871
    %v880 = vrcp.pop %v872
    %v881 = vrcp.pop %v873
    %v882 = vrcp.pop %v874
    %v883 = vrcp.pop %v875
    %v884 = vrcp.pop %v876
    %v885 = vrcp.pop %v877
    %v886 = vmul.f32 %v831, %v878
    %v887 = vmul.f32 %v833, %v879
    %v888 = vmul.f32 %v835, %v880
    %v889 = vmul.f32 %v837, %v881
    %v890 = vmul.f32 %v839, %v882
    %v891 = vmul.f32 %v841, %v883
    %v892 = vmul.f32 %v843, %v884
    %v893 = vmul.f32 %v845, %v885
    %v894 = vpack.c.bf16 %v887, %v886
    %v895 = vpack.c.bf16 %v889, %v888
    %v896 = vpack.c.bf16 %v891, %v890
    %v897 = vpack.c.bf16 %v893, %v892
    %898 = vrot.lane.b32.xlu0 %v761, 64
    %v899 = vpop.permute.xlu0 %898
    %900 = vrot.lane.b32.xlu0 %v762, 64
    %v901 = vpop.permute.xlu0 %900
    %902 = vrot.lane.b32.xlu0 %v763, 64
    %v903 = vpop.permute.xlu0 %902
    %904 = vrot.lane.b32.xlu0 %v764, 64
    %v905 = vpop.permute.xlu0 %904
    %v911 = vsel %vm274, %v894, 0
    %v914 = vsel %vm274, %v895, 0
    %v917 = vsel %vm274, %v896, 0
    %v920 = vsel %vm274, %v897, 0
    %922 = vmatpush.bf16.msra.mxu0 0
    %923 = vmatpush.bf16.msra.mxu0 0
    %924 = vmatpush.bf16.msra.mxu0 0
    %925 = vmatpush.bf16.msra.mxu0 0
    %926 = vmatpush.bf16.msra.mxu0 %v905
    %927 = vmatpush.bf16.msra.mxu0 %v903
    %928 = vmatpush.bf16.msra.mxu0 %v901
    %929 = vmatpush.bf16.msra.mxu0 %v899
    %930 = vmatmul.bf16.gmra.mxu0 %v911
    %v931 = vpop.f32.mrf.mxu0
    %v932 = vadd.f32 0.0, %v931
    %v933 = vpop.f32.mrf.mxu0
    %v934 = vadd.f32 0.0, %v933
    %935 = vmatmul.bf16.gmra.mxu0 %v914
    %v936 = vpop.f32.mrf.mxu0
    %v937 = vadd.f32 0.0, %v936
    %v938 = vpop.f32.mrf.mxu0
    %v939 = vadd.f32 0.0, %v938
    %940 = vmatmul.bf16.gmra.mxu0 %v917
    %v941 = vpop.f32.mrf.mxu0
    %v942 = vadd.f32 0.0, %v941
    %v943 = vpop.f32.mrf.mxu0
    %v944 = vadd.f32 0.0, %v943
    %945 = vmatmul.bf16.gmra.mxu0 %v920
    %v946 = vpop.f32.mrf.mxu0
    %v947 = vadd.f32 0.0, %v946
    %v948 = vpop.f32.mrf.mxu0
    %v949 = vadd.f32 0.0, %v948
    %950 = vdwg.mxu0
    %953 = vrot.lane.b32.xlu0 %v937, 8
    %v954 = vpop.permute.xlu0 %953
    %955 = vrot.lane.b32.xlu0 %v939, 8
    %v956 = vpop.permute.xlu0 %955
    %961 = vrot.lane.b32.xlu0 %v942, 16
    %v962 = vpop.permute.xlu0 %961
    %963 = vrot.lane.b32.xlu0 %v944, 16
    %v964 = vpop.permute.xlu0 %963
    %969 = vrot.lane.b32.xlu0 %v947, 24
    %v970 = vpop.permute.xlu0 %969
    %971 = vrot.lane.b32.xlu0 %v949, 24
    %v972 = vpop.permute.xlu0 %971
    %v975 = vsel %vm204, %v932, %v954
    %v976 = vsel %vm204, %v934, %v956
    %v977 = vsel %vm406, %v975, %v962
    %v978 = vsel %vm406, %v976, %v964
    %v979 = vsel %vm409, %v977, %v970
    %v980 = vsel %vm409, %v978, %v972
    %v981 = vpack.c.bf16 %v980, %v979
    %v982 = vunpack.c.l.bf16 %v630
    %v983 = vperm.slane %v982, 0
    %v988 = vunpack.c.l.b16 %v626
    %v989 = vunpack.c.l.b16 %v627
    %v990 = vunpack.c.l.b16 %v628
    %v991 = vunpack.c.l.b16 %v629
    %v992 = vpack.c.b16 %v989, %v988
    %v993 = vpack.c.b16 %v991, %v990
    %v997 = vsel %vm74, %v981, 0
    %999 = vmatpush.bf16.msra.mxu0 0
    %1000 = vmatpush.bf16.msra.mxu0 0
    %1001 = vmatpush.bf16.msra.mxu0 0
    %1002 = vmatpush.bf16.msra.mxu0 0
    %1003 = vmatpush.bf16.msra.mxu0 0
    %1004 = vmatpush.bf16.msra.mxu0 0
    %1005 = vmatpush.bf16.msra.mxu0 %v993
    %1006 = vmatpush.bf16.msra.mxu0 %v992
    %1007 = vmatmul.bf16.gmra.mxu0 %v997
    %v1008 = vpop.f32.mrf.mxu0
    %v1009 = vadd.f32 %v983, %v1008
    %v1010 = vpop.f32.mrf.mxu0
    %v1011 = vadd.f32 %v983, %v1010
    %1012 = vdwg.mxu0
    %v1013 = vadd.f32 %v615, %v1009
    %v1014 = vadd.f32 %v616, %v1011
    %v1015 = vsel %vm74, %v1013, 0.0
    %1016 = vadd.xlane.f32.xlu0 %v1015
    %v1017 = vpop.xlane.xlu0 %1016
    %v1018 = vsel %vm74, %v1014, 0.0
    %1019 = vadd.xlane.f32.xlu0 %v1018
    %v1020 = vpop.xlane.xlu0 %1019
    %v1021 = vmul.f32 %v1017, %v87
    %v1022 = vmul.f32 %v1020, %v87
    %v1023 = vmul.f32 %v1013, %v1013
    %v1024 = vmul.f32 %v1014, %v1014
    %v1025 = vsel %vm74, %v1023, 0.0
    %1026 = vadd.xlane.f32.xlu0 %v1025
    %v1027 = vpop.xlane.xlu0 %1026
    %v1028 = vsel %vm74, %v1024, 0.0
    %1029 = vadd.xlane.f32.xlu0 %v1028
    %v1030 = vpop.xlane.xlu0 %1029
    %v1031 = vmul.f32 %v1027, %v87
    %v1032 = vmul.f32 %v1030, %v87
    %v1033 = vmul.f32 %v1021, %v1021
    %v1034 = vmul.f32 %v1022, %v1022
    %v1035 = vsub.f32 %v1031, %v1033
    %v1036 = vsub.f32 %v1032, %v1034
    %v1037 = vsub.f32 %v1013, %v1021
    %v1038 = vsub.f32 %v1014, %v1022
    %v1039 = vadd.f32 %v1035, 1e-05
    %v1040 = vadd.f32 %v1036, 1e-05
    %v1041 = vrsqrt.pop %v1039
    %v1042 = vmul.f32 %v1041, %v1039
    %v1043 = vmul.f32 %v1042, %v1041
    %v1044 = vmul.f32 0.5, %v1043
    %v1045 = vsub.f32 1.5, %v1044
    %v1046 = vmul.f32 %v1041, %v1045
    %vm1047 = vweird.f32 %v1039
    %vm1048 = vweird.f32 %v1041
    %vm1049 = vmor %vm1047, %vm1048
    %v1050 = vsel %vm1049, %v1041, %v1046
    %v1051 = vrsqrt.pop %v1040
    %v1052 = vmul.f32 %v1051, %v1040
    %v1053 = vmul.f32 %v1052, %v1051
    %v1054 = vmul.f32 0.5, %v1053
    %v1055 = vsub.f32 1.5, %v1054
    %v1056 = vmul.f32 %v1051, %v1055
    %vm1057 = vweird.f32 %v1040
    %vm1058 = vweird.f32 %v1051
    %vm1059 = vmor %vm1057, %vm1058
    %v1060 = vsel %vm1059, %v1051, %v1056
    %v1061 = vmul.f32 %v1037, %v1050
    %v1062 = vmul.f32 %v1038, %v1060
    %v1063 = vperm.slane %v618, 2
    %v1064 = vmul.f32 %v1061, %v1063
    %v1065 = vmul.f32 %v1062, %v1063
    %v1066 = vperm.slane %v618, 3
    %v1067 = vadd.f32 %v1064, %v1066
    %v1068 = vadd.f32 %v1065, %v1066
    %v1069 = vpack.c.bf16 %v1068, %v1067
    %v1070 = vunpack.c.l.bf16 %v636
    %v1071 = vperm.slane %v1070, 0
    %v1076 = vunpack.c.l.b16 %v632
    %v1077 = vunpack.c.l.b16 %v633
    %v1078 = vunpack.c.l.b16 %v634
    %v1079 = vunpack.c.l.b16 %v635
    %v1080 = vpack.c.b16 %v1077, %v1076
    %v1081 = vpack.c.b16 %v1079, %v1078
    %v1085 = vsel %vm74, %v1069, 0
    %1087 = vmatpush.bf16.msra.mxu0 0
    %1088 = vmatpush.bf16.msra.mxu0 0
    %1089 = vmatpush.bf16.msra.mxu0 0
    %1090 = vmatpush.bf16.msra.mxu0 0
    %1091 = vmatpush.bf16.msra.mxu0 0
    %1092 = vmatpush.bf16.msra.mxu0 0
    %1093 = vmatpush.bf16.msra.mxu0 %v1081
    %1094 = vmatpush.bf16.msra.mxu0 %v1080
    %1095 = vmatmul.bf16.gmra.mxu0 %v1085
    %v1096 = vpop.f32.mrf.mxu0
    %v1097 = vadd.f32 %v1071, %v1096
    %v1098 = vpop.f32.mrf.mxu0
    %v1099 = vadd.f32 %v1071, %v1098
    %1100 = vdwg.mxu0
    %v1101 = vmul.f32 %v1097, %v1097
    %v1102 = vmul.f32 %v1099, %v1099
    %v1103 = vmul.f32 %v1097, %v1101
    %v1104 = vmul.f32 %v1099, %v1102
    %v1105 = vmul.f32 %v1103, 0.044715
    %v1106 = vmul.f32 %v1104, 0.044715
    %v1107 = vadd.f32 %v1097, %v1105
    %v1108 = vadd.f32 %v1099, %v1106
    %v1109 = vmul.f32 %v1107, 0.7978846
    %v1110 = vmul.f32 %v1108, 0.7978846
    %v1111 = vtanh.pop %v1109
    %v1112 = vtanh.pop %v1110
    %v1113 = vadd.f32 %v1111, 1.0
    %v1114 = vadd.f32 %v1112, 1.0
    %v1115 = vmul.f32 %v1113, 0.5
    %v1116 = vmul.f32 %v1114, 0.5
    %v1117 = vmul.f32 %v1097, %v1115
    %v1118 = vmul.f32 %v1099, %v1116
    %v1119 = vpack.c.bf16 %v1118, %v1117
    %v1120 = vunpack.c.l.bf16 %v654
    %v1121 = vperm.slane %v1120, 0
    %v1138 = vunpack.c.l.b16 %v638
    %v1139 = vunpack.c.l.b16 %v639
    %v1140 = vunpack.c.l.b16 %v640
    %v1141 = vunpack.c.l.b16 %v641
    %v1142 = vunpack.c.l.b16 %v642
    %v1143 = vunpack.c.l.b16 %v643
    %v1144 = vunpack.c.l.b16 %v644
    %v1145 = vunpack.c.l.b16 %v645
    %v1146 = vunpack.c.l.b16 %v646
    %v1147 = vunpack.c.l.b16 %v647
    %v1148 = vunpack.c.l.b16 %v648
    %v1149 = vunpack.c.l.b16 %v649
    %v1150 = vunpack.c.l.b16 %v650
    %v1151 = vunpack.c.l.b16 %v651
    %v1152 = vunpack.c.l.b16 %v652
    %v1153 = vunpack.c.l.b16 %v653
    %v1154 = vpack.c.b16 %v1139, %v1138
    %v1155 = vpack.c.b16 %v1141, %v1140
    %v1156 = vpack.c.b16 %v1143, %v1142
    %v1157 = vpack.c.b16 %v1145, %v1144
    %v1158 = vpack.c.b16 %v1147, %v1146
    %v1159 = vpack.c.b16 %v1149, %v1148
    %v1160 = vpack.c.b16 %v1151, %v1150
    %v1161 = vpack.c.b16 %v1153, %v1152
    %1170 = vmatpush.bf16.msra.mxu0 %v1161
    %1171 = vmatpush.bf16.msra.mxu0 %v1160
    %1172 = vmatpush.bf16.msra.mxu0 %v1159
    %1173 = vmatpush.bf16.msra.mxu0 %v1158
    %1174 = vmatpush.bf16.msra.mxu0 %v1157
    %1175 = vmatpush.bf16.msra.mxu0 %v1156
    %1176 = vmatpush.bf16.msra.mxu0 %v1155
    %1177 = vmatpush.bf16.msra.mxu0 %v1154
    %1178 = vmatmul.bf16.gmra.mxu0 %v1119
    %v1179 = vpop.f32.mrf.mxu0
    %v1180 = vadd.f32 %v1121, %v1179
    %v1181 = vpop.f32.mrf.mxu0
    %v1182 = vadd.f32 %v1121, %v1181
    %1183 = vdwg.mxu0
    %v1184 = vadd.f32 %v1013, %v1180
    %v1185 = vadd.f32 %v1014, %v1182
    %s1186 = scalar_lea.vmem %s2, 8
    %v1187 = vld [vmem:[%s1186] sm:$0xf]
    %v1188 = vsel %vm74, %v1184, 0.0
    %1189 = vadd.xlane.f32.xlu0 %v1188
    %v1190 = vpop.xlane.xlu0 %1189
    %v1191 = vsel %vm74, %v1185, 0.0
    %1192 = vadd.xlane.f32.xlu0 %v1191
    %v1193 = vpop.xlane.xlu0 %1192
    %v1194 = vmul.f32 %v1190, %v87
    %v1195 = vmul.f32 %v1193, %v87
    %v1196 = vmul.f32 %v1184, %v1184
    %v1197 = vmul.f32 %v1185, %v1185
    %v1198 = vsel %vm74, %v1196, 0.0
    %1199 = vadd.xlane.f32.xlu0 %v1198
    %v1200 = vpop.xlane.xlu0 %1199
    %v1201 = vsel %vm74, %v1197, 0.0
    %1202 = vadd.xlane.f32.xlu0 %v1201
    %v1203 = vpop.xlane.xlu0 %1202
    %v1204 = vmul.f32 %v1200, %v87
    %v1205 = vmul.f32 %v1203, %v87
    %v1206 = vmul.f32 %v1194, %v1194
    %v1207 = vmul.f32 %v1195, %v1195
    %v1208 = vsub.f32 %v1204, %v1206
    %v1209 = vsub.f32 %v1205, %v1207
    %v1210 = vsub.f32 %v1184, %v1194
    %v1211 = vsub.f32 %v1185, %v1195
    %v1212 = vadd.f32 %v1208, 1e-05
    %v1213 = vadd.f32 %v1209, 1e-05
    %v1214 = vrsqrt.pop %v1212
    %v1215 = vmul.f32 %v1214, %v1212
    %v1216 = vmul.f32 %v1215, %v1214
    %v1217 = vmul.f32 0.5, %v1216
    %v1218 = vsub.f32 1.5, %v1217
    %v1219 = vmul.f32 %v1214, %v1218
    %vm1220 = vweird.f32 %v1212
    %vm1221 = vweird.f32 %v1214
    %vm1222 = vmor %vm1220, %vm1221
    %v1223 = vsel %vm1222, %v1214, %v1219
    %v1224 = vrsqrt.pop %v1213
    %v1225 = vmul.f32 %v1224, %v1213
    %v1226 = vmul.f32 %v1225, %v1224
    %v1227 = vmul.f32 0.5, %v1226
    %v1228 = vsub.f32 1.5, %v1227
    %v1229 = vmul.f32 %v1224, %v1228
    %vm1230 = vweird.f32 %v1213
    %vm1231 = vweird.f32 %v1224
    %vm1232 = vmor %vm1230, %vm1231
    %v1233 = vsel %vm1232, %v1224, %v1229
    %v1234 = vmul.f32 %v1210, %v1223
    %v1235 = vmul.f32 %v1211, %v1233
    %v1236 = vperm.slane %v1187, 0
    %v1237 = vmul.f32 %v1234, %v1236
    %v1238 = vmul.f32 %v1235, %v1236
    %v1239 = vperm.slane %v1187, 1
    %v1240 = vadd.f32 %v1237, %v1239
    %v1241 = vadd.f32 %v1238, %v1239
    %v1242 = vpack.c.bf16 %v1241, %v1240
    %v1243 = vld [vmem:[%s7] sm:$0xf]
    %v1244 = vld [vmem:[%s7 + $0x4] sm:$0xf]
    %v1245 = vld [vmem:[%s7 + $0x8] sm:$0xf]
    %v1246 = vld [vmem:[%s7 + $0xc] sm:$0xf]
    %v1251 = vunpack.c.l.b16 %v1243
    %v1252 = vunpack.c.l.b16 %v1244
    %v1253 = vunpack.c.l.b16 %v1245
    %v1254 = vunpack.c.l.b16 %v1246
    %v1255 = vpack.c.b16 %v1252, %v1251
    %v1256 = vpack.c.b16 %v1254, %v1253
    %v1260 = vsel %vm74, %v1242, 0
    %1262 = vmatpush.bf16.msra.mxu0 0
    %1263 = vmatpush.bf16.msra.mxu0 0
    %1264 = vmatpush.bf16.msra.mxu0 0
    %1265 = vmatpush.bf16.msra.mxu0 0
    %1266 = vmatpush.bf16.msra.mxu0 0
    %1267 = vmatpush.bf16.msra.mxu0 0
    %1268 = vmatpush.bf16.msra.mxu0 %v1256
    %1269 = vmatpush.bf16.msra.mxu0 %v1255
    %1270 = vmatmul.bf16.gmra.mxu0 %v1260
    %v1271 = vpop.f32.mrf.mxu0
    %v1272 = vadd.f32 0.0, %v1271
    %v1273 = vpop.f32.mrf.mxu0
    %v1274 = vadd.f32 0.0, %v1273
    %1275 = vdwg.mxu0
    %1276 = vst [vmem:[#allocation2] sm:$0xff] %v1272
    %1277 = vst [vmem:[#allocation2 + $0x8] sm:$0xff] %v1274
    // Predicated region
    $region34: #{gpt_forward.1} parent=1 // pred_check
      _
    $region35: #{gpt_forward.1} parent=1 // pred_check_branch
      %1279 = sbr.rel (0) target = $region37
    $region36: #{gpt_forward.1} parent=1 // pred_region
      %1281 = vsyncadd [#allocation3], 0
      %s1282 = sshll.u32 [#allocation2], 4
      %s1283 = int_to_ptr.vmem [resolvable:$true] %s1282
      %s1284 = sshll.u32 %s8, 4
      %s1285 = int_to_ptr.hbm [resolvable:$true] %s1284
      %1290 = dma.vmem_to_hbm [thread:$0]  %s1283, 256, %s1285, [#allocation3], 128, 128, 8
    $region37: #{gpt_forward.1} parent=1 // pred_fallthru
      _
    // Predicated region
    $region38: #{gpt_forward.1} parent=1 // pred_check
      _
    $region39: #{gpt_forward.1} parent=1 // pred_check_branch
      %1292 = sbr.rel (0) target = $region41
    $region40: #{gpt_forward.1} parent=1 // pred_region
      %1294 = dma.done [#allocation3], 256
    $region41: #{gpt_forward.1} parent=1 // pred_fallthru
      _
    %1295 = vsyncpa [#allocation3], 1

</llo_original>
